<compile_context>
chip_gen: v7x
topology: tpu7x:2x2x1
jax: 0.10.0
libtpu: 0.0.40
codegen_flags: <defaults>
</compile_context>

<pallas_src>
import functools

import jax
import jax.numpy as jnp
from jax.experimental import pallas as pl
from jax.experimental.pallas import tpu as pltpu

NUM_CLASSES = 13
NUM_CLASSES_PADDED = 128   # lane-dense fc output width (13 -> 128)


# -----------------------------------------------------------------------------
# Pallas kernel: conv3x3 (+ReLU) + global-avg-pool + Linear(->1280) + ReLU + fc
# -----------------------------------------------------------------------------
def transfer_learning_kernel(
    xcol_ref,   # [B*H*W, 9*C]  f32   im2col patches (k = di*3+dj major, C minor)
    wc_ref,     # [9*C, CF]     f32   conv weight
    bc_ref,     # [1, CF]       f32   conv bias
    w1_ref,     # [CF, E]       bf16  extractor Linear weight, pre-scaled by 1/(H*W)
    b1_ref,     # [1, E]        f32
    w2_ref,     # [E, 128]      bf16  fc weight, lane-padded 13 -> 128
    b2_ref,     # [1, 128]      f32
    out_ref,    # [BP, 128]     f32   padded logits
    *, batch, hw, bp,
):
    cf = wc_ref.shape[-1]

    # ---- 3x3 conv (stride 1, pad 1) as ONE K=9*C MXU matmul over im2col rows -----
    conv = jnp.dot(xcol_ref[...], wc_ref[...],
                   preferred_element_type=jnp.float32)       # [B*H*W, CF]
    conv = jnp.maximum(conv + bc_ref[...], 0.0)              # bias + ReLU

    # ---- global average pool: 1/(H*W) is folded into w1, so a sum suffices ------
    # hw is a multiple of 8 -> the sublane split is tile-preserving (XLU reduce).
    pooled = jnp.sum(conv.reshape(batch, hw, cf), axis=1)    # [B, CF]
    if bp > batch:
        # Pad batch rows so the final store below is an unmasked full-tile vst.
        pooled = jnp.concatenate(
            [pooled, jnp.zeros((bp - batch, cf), jnp.float32)], axis=0)  # [BP, CF]

    # ---- frozen extractor tail: Linear(CF -> E) + ReLU (bf16 x bf16 -> f32 MXU) --
    h = jnp.dot(pooled.astype(jnp.bfloat16), w1_ref[...],
                preferred_element_type=jnp.float32) + b1_ref[...]
    h = jnp.maximum(h, 0.0)                                   # [BP, E]

    # ---- the module's fc: Linear(E -> num_classes), lane-padded to 128 ----------
    out_ref[...] = jnp.dot(h.astype(jnp.bfloat16), w2_ref[...],
                           preferred_element_type=jnp.float32) + b2_ref[...]


# -----------------------------------------------------------------------------
# Wrapper: lightweight staging + pallas_call
# -----------------------------------------------------------------------------
@jax.jit
def transfer_learning_forward(x_nchw, params):
    """x_nchw: [B, C, H, W] float32 (PyTorch layout). Returns logits [B, 13]."""
    w_conv, b_conv, w1, b1, w2, b2 = params
    B, C, H, W = x_nchw.shape
    CF = w_conv.shape[-1]
    E = w1.shape[-1]
    HW = H * W
    BP = max(8, -(-B // 8) * 8)          # sublane-dense output rows

    # NCHW -> NHWC, zero-pad H and W by 1, stage im2col [B*H*W, 9*C] (72 KiB logical).
    x = jnp.transpose(x_nchw, (0, 2, 3, 1))
    xp = jnp.pad(x, ((0, 0), (1, 1), (1, 1), (0, 0)))               # [B, H+2, W+2, C]
    patches = [xp[:, di:di + H, dj:dj + W, :]
               for di in range(3) for dj in range(3)]                # k = di*3 + dj
    x_col = jnp.stack(patches, axis=3).reshape(B * HW, 9 * C)        # [B*H*W, 9*C]

    wc = w_conv.reshape(9 * C, CF)                                   # (di,dj,c) major
    bc = b_conv.reshape(1, CF)

    # bf16 weights for the two big Linear operands; fold 1/(H*W) of the pool into w1
    # BEFORE the bf16 cast (exact when H*W is a power of two, as here).
    w1s = (w1 / float(HW)).astype(jnp.bfloat16)                      # [CF, E]
    b1r = b1.reshape(1, E)
    pad_n = NUM_CLASSES_PADDED - w2.shape[1]
    w2p = jnp.pad(w2.astype(jnp.bfloat16), ((0, 0), (0, pad_n)))     # [E, 128]
    b2p = jnp.pad(b2.reshape(1, -1), ((0, 0), (0, pad_n)))           # [1, 128]

    flops = (2 * B * HW * (9 * C) * CF
             + 2 * BP * CF * E
             + 2 * BP * E * NUM_CLASSES_PADDED)
    bytes_accessed = (x_col.size * 4 + wc.size * 4 + bc.size * 4
                      + w1s.size * 2 + b1r.size * 4
                      + w2p.size * 2 + b2p.size * 4
                      + BP * NUM_CLASSES_PADDED * 4)

    # Single grid-less invocation: every operand (< ~1 MiB with lane padding) lives
    # as a full-array VMEM block; conv, pool, both Linears and both ReLUs are fused.
    vmem = pl.BlockSpec(memory_space=pltpu.MemorySpace.VMEM)
    kernel = functools.partial(transfer_learning_kernel, batch=B, hw=HW, bp=BP)
    out = pl.pallas_call(
        kernel,
        out_shape=jax.ShapeDtypeStruct((BP, NUM_CLASSES_PADDED), jnp.float32),
        in_specs=[vmem] * 7,
        out_specs=vmem,
        cost_estimate=pl.CostEstimate(flops=flops, transcendentals=0,
                                      bytes_accessed=bytes_accessed),
    )(x_col, wc, bc, w1s, b1r, w2p, b2p)
    return out[:B, :NUM_CLASSES]


# -----------------------------------------------------------------------------
# Deterministic parameter construction (synthetic; no checkpoint loading)
# -----------------------------------------------------------------------------
def make_params(key, c_in=4, c_feat=32, embed=1280, num_classes=NUM_CLASSES):
    k = jax.random.split(key, 6)
    w_conv = 0.1 * jax.random.normal(k[0], (3, 3, c_in, c_feat), jnp.float32)
    b_conv = 0.1 * jax.random.normal(k[1], (c_feat,), jnp.float32)
    w1 = 0.05 * jax.random.normal(k[2], (c_feat, embed), jnp.float32)
    b1 = 0.05 * jax.random.normal(k[3], (embed,), jnp.float32)
    w2 = 0.02 * jax.random.normal(k[4], (embed, num_classes), jnp.float32)   # fc weight
    b2 = 0.02 * jax.random.normal(k[5], (num_classes,), jnp.float32)         # fc bias
    return (w_conv, b_conv, w1, b1, w2, b2)


def reference_forward(x_nchw, params):
    """Plain-JAX reference mirroring the kernel's bf16 operand rounding exactly."""
    w_conv, b_conv, w1, b1, w2, b2 = params
    B, C, H, W = x_nchw.shape
    CF = w_conv.shape[-1]
    hi = jax.lax.Precision.HIGHEST

    x = jnp.transpose(x_nchw, (0, 2, 3, 1))
    xp = jnp.pad(x, ((0, 0), (1, 1), (1, 1), (0, 0)))
    acc = 0.0
    for di in range(3):
        for dj in range(3):
            acc = acc + jnp.einsum("bhwc,cf->bhwf",
                                   xp[:, di:di + H, dj:dj + W, :],
                                   w_conv[di, dj], precision=hi)
    conv = jnp.maximum(acc + b_conv.reshape(1, 1, 1, CF), 0.0)
    pooled_sum = conv.sum(axis=(1, 2))                               # [B, CF]

    w1q = (w1 / float(H * W)).astype(jnp.bfloat16)                   # scale folded pre-cast
    h = jnp.dot(pooled_sum.astype(jnp.bfloat16), w1q,
                precision=hi, preferred_element_type=jnp.float32) + b1.reshape(1, -1)
    h = jnp.maximum(h, 0.0)
    w2q = w2.astype(jnp.bfloat16)
    return jnp.dot(h.astype(jnp.bfloat16), w2q,
                   precision=hi, preferred_element_type=jnp.float32) + b2.reshape(1, -1)


if __name__ == "__main__":
    key = jax.random.PRNGKey(0)
    kx, kp = jax.random.split(key)

    B, C, H, W = 2, 4, 16, 16
    x = jax.random.normal(kx, (B, C, H, W), jnp.float32)
    params = make_params(kp, c_in=C, c_feat=32, embed=1280, num_classes=NUM_CLASSES)

    # NOTE: torch.no_grad() only disables autograd; forward semantics are unchanged.
    out = transfer_learning_forward(x, params)
    out = jax.block_until_ready(out)

    ref = reference_forward(x, params)
    assert out.shape == (B, NUM_CLASSES), out.shape
    max_err = float(jnp.max(jnp.abs(out - ref)))
    assert jnp.allclose(out, ref, atol=2e-3, rtol=2e-3), max_err
    print("KERNEL_OK")
</pallas_src>

<mosaic_0001>
module attributes {stable_mosaic.version = 11 : i64} {
  func.func @transfer_learning_kernel(%arg0: memref<512x36xf32, #tpu.memory_space<vmem>>, %arg1: memref<36x32xf32, #tpu.memory_space<vmem>>, %arg2: memref<1x32xf32, #tpu.memory_space<vmem>>, %arg3: memref<32x1280xbf16, #tpu.memory_space<vmem>>, %arg4: memref<1x1280xf32, #tpu.memory_space<vmem>>, %arg5: memref<1280x128xbf16, #tpu.memory_space<vmem>>, %arg6: memref<1x128xf32, #tpu.memory_space<vmem>>, %arg7: memref<8x128xf32, #tpu.memory_space<vmem>>) attributes {dimension_semantics = [], scalar_prefetch = 0 : i64, scratch_operands = 0 : i64, tpu.core_type = #tpu.core_type<tc>} {
    %c0 = arith.constant 0 : index
    %c0_0 = arith.constant 0 : index
    %0 = vector.load %arg0[%c0, %c0_0] : memref<512x36xf32, #tpu.memory_space<vmem>>, vector<512x36xf32>
    %c0_1 = arith.constant 0 : index
    %c0_2 = arith.constant 0 : index
    %1 = vector.load %arg1[%c0_1, %c0_2] : memref<36x32xf32, #tpu.memory_space<vmem>>, vector<36x32xf32>
    %cst = arith.constant dense<0.000000e+00> : vector<512x32xf32>
    %2 = tpu.matmul %0, %1, %cst {dimension_numbers = #tpu.dot_dimension_numbers<[1], [0], [0], [1], [0, 0, 1, 1], [], []>} : vector<512x36xf32>, vector<36x32xf32>, vector<512x32xf32> -> vector<512x32xf32>
    %c0_3 = arith.constant 0 : index
    %c0_4 = arith.constant 0 : index
    %3 = vector.load %arg2[%c0_3, %c0_4] : memref<1x32xf32, #tpu.memory_space<vmem>>, vector<1x32xf32>
    %4 = vector.broadcast %3 : vector<1x32xf32> to vector<512x32xf32>
    %5 = arith.addf %2, %4 : vector<512x32xf32>
    %cst_5 = arith.constant 0.000000e+00 : f32
    %6 = vector.broadcast %cst_5 : f32 to vector<512x32xf32>
    %7 = arith.maximumf %5, %6 : vector<512x32xf32>
    %8 = vector.shape_cast %7 : vector<512x32xf32> to vector<2x256x32xf32>
    %cst_6 = arith.constant dense<0.000000e+00> : vector<2x32xf32>
    %9 = vector.multi_reduction <add>, %8, %cst_6 [1] : vector<2x256x32xf32> to vector<2x32xf32>
    %cst_7 = arith.constant 0.000000e+00 : f32
    %10 = vector.broadcast %cst_7 : f32 to vector<6x32xf32>
    %11 = tpu.concatenate %9, %10 in 0 : vector<2x32xf32>, vector<6x32xf32> -> vector<8x32xf32>
    %12 = arith.truncf %11 : vector<8x32xf32> to vector<8x32xbf16>
    %c0_8 = arith.constant 0 : index
    %c0_9 = arith.constant 0 : index
    %13 = vector.load %arg3[%c0_8, %c0_9] : memref<32x1280xbf16, #tpu.memory_space<vmem>>, vector<32x1280xbf16>
    %cst_10 = arith.constant dense<0.000000e+00> : vector<8x1280xf32>
    %14 = tpu.matmul %12, %13, %cst_10 {dimension_numbers = #tpu.dot_dimension_numbers<[1], [0], [0], [1], [0, 0, 1, 1], [], []>} : vector<8x32xbf16>, vector<32x1280xbf16>, vector<8x1280xf32> -> vector<8x1280xf32>
    %c0_11 = arith.constant 0 : index
    %c0_12 = arith.constant 0 : index
    %15 = vector.load %arg4[%c0_11, %c0_12] : memref<1x1280xf32, #tpu.memory_space<vmem>>, vector<1x1280xf32>
    %16 = vector.broadcast %15 : vector<1x1280xf32> to vector<8x1280xf32>
    %17 = arith.addf %14, %16 : vector<8x1280xf32>
    %cst_13 = arith.constant 0.000000e+00 : f32
    %18 = vector.broadcast %cst_13 : f32 to vector<8x1280xf32>
    %19 = arith.maximumf %17, %18 : vector<8x1280xf32>
    %20 = arith.truncf %19 : vector<8x1280xf32> to vector<8x1280xbf16>
    %c0_14 = arith.constant 0 : index
    %c0_15 = arith.constant 0 : index
    %21 = vector.load %arg5[%c0_14, %c0_15] : memref<1280x128xbf16, #tpu.memory_space<vmem>>, vector<1280x128xbf16>
    %cst_16 = arith.constant dense<0.000000e+00> : vector<8x128xf32>
    %22 = tpu.matmul %20, %21, %cst_16 {dimension_numbers = #tpu.dot_dimension_numbers<[1], [0], [0], [1], [0, 0, 1, 1], [], []>} : vector<8x1280xbf16>, vector<1280x128xbf16>, vector<8x128xf32> -> vector<8x128xf32>
    %c0_17 = arith.constant 0 : index
    %c0_18 = arith.constant 0 : index
    %23 = vector.load %arg6[%c0_17, %c0_18] : memref<1x128xf32, #tpu.memory_space<vmem>>, vector<1x128xf32>
    %24 = vector.broadcast %23 : vector<1x128xf32> to vector<8x128xf32>
    %25 = arith.addf %22, %24 : vector<8x128xf32>
    %c0_19 = arith.constant 0 : index
    %c0_20 = arith.constant 0 : index
    %26 = vector.load %arg7[%c0_19, %c0_20] : memref<8x128xf32, #tpu.memory_space<vmem>>, vector<8x128xf32>
    tpu.vector_store %arg7[%c0_19, %c0_20], %25 {strides = array<i32>} : memref<8x128xf32, #tpu.memory_space<vmem>>, vector<8x128xf32>,
    return
  }
}

</mosaic_0001>

<llo_original>
// kernel: transfer_learning_forward.1
$region0: #{transfer_learning_forward.1}
  #allocation0 [shape = 'u32[]', space=smem, size = 0x4, offset = 0x4, fixed_abs, tag = 'smem constant byte address 0x4 - core index']
  #allocation1 [shape = 'u32[144,128]{1,0:T(1,128)}', space=vmem, size = 0x12000, scoped, tag = 'internal scratch']
  %s0 = inlined_call_operand.vmem [shape: f32[512,36], index: 0, kind: input, shape index: {}]
  %s1 = inlined_call_operand.vmem [shape: f32[36,32], index: 1, kind: input, shape index: {}]
  %s2 = inlined_call_operand.vmem [shape: f32[1,32], index: 2, kind: input, shape index: {}]
  %s3 = inlined_call_operand.vmem [shape: bf16[32,1280], index: 3, kind: input, shape index: {}]
  %s4 = inlined_call_operand.vmem [shape: f32[1,1280], index: 4, kind: input, shape index: {}]
  %s5 = inlined_call_operand.vmem [shape: bf16[1280,128], index: 5, kind: input, shape index: {}]
  %s6 = inlined_call_operand.vmem [shape: f32[1,128], index: 6, kind: input, shape index: {}]
  %s7 = inlined_call_operand.vmem [shape: f32[8,128], index: 7, kind: output, shape index: {}]
  %s8 = sld [smem:[#allocation0]]
  $region38: #{transfer_learning_forward.1} parent=0
    _
  %s10 = ssub.s32 1, %s8
  %s11 = scalar_select 0, %s10, %s8
  // Predicated region
  $region2: #{transfer_learning_forward.1} parent=0 // pred_check
    _
  $region3: #{transfer_learning_forward.1} parent=0 // pred_check_branch
    %13 = sbr.rel (0) target = $region5
  $region4: #{transfer_learning_forward.1} parent=0 // pred_region
    _
  $region5: #{transfer_learning_forward.1} parent=0 // pred_fallthru
    _
  // Predicated region
  $region6: #{transfer_learning_forward.1} parent=0 // pred_check
    _
  $region7: #{transfer_learning_forward.1} parent=0 // pred_check_branch
    %15 = sbr.rel (0) target = $region9
  $region8: #{transfer_learning_forward.1} parent=0 // pred_region
    _
  $region9: #{transfer_learning_forward.1} parent=0 // pred_fallthru
    _
  // Predicated region
  $region10: #{transfer_learning_forward.1} parent=0 // pred_check
    _
  $region11: #{transfer_learning_forward.1} parent=0 // pred_check_branch
    %17 = sbr.rel (0) target = $region13
  $region12: #{transfer_learning_forward.1} parent=0 // pred_region
    _
  $region13: #{transfer_learning_forward.1} parent=0 // pred_fallthru
    _
  // Predicated region
  $region14: #{transfer_learning_forward.1} parent=0 // pred_check
    _
  $region15: #{transfer_learning_forward.1} parent=0 // pred_check_branch
    %19 = sbr.rel (0) target = $region17
  $region16: #{transfer_learning_forward.1} parent=0 // pred_region
    _
  $region17: #{transfer_learning_forward.1} parent=0 // pred_fallthru
    _
  // Predicated region
  $region18: #{transfer_learning_forward.1} parent=0 // pred_check
    _
  $region19: #{transfer_learning_forward.1} parent=0 // pred_check_branch
    %21 = sbr.rel (0) target = $region21
  $region20: #{transfer_learning_forward.1} parent=0 // pred_region
    _
  $region21: #{transfer_learning_forward.1} parent=0 // pred_fallthru
    _
  // Predicated region
  $region22: #{transfer_learning_forward.1} parent=0 // pred_check
    _
  $region23: #{transfer_learning_forward.1} parent=0 // pred_check_branch
    %23 = sbr.rel (0) target = $region25
  $region24: #{transfer_learning_forward.1} parent=0 // pred_region
    _
  $region25: #{transfer_learning_forward.1} parent=0 // pred_fallthru
    _
  // Predicated region
  $region26: #{transfer_learning_forward.1} parent=0 // pred_check
    _
  $region27: #{transfer_learning_forward.1} parent=0 // pred_check_branch
    %25 = sbr.rel (0) target = $region29
  $region28: #{transfer_learning_forward.1} parent=0 // pred_region
    _
  $region29: #{transfer_learning_forward.1} parent=0 // pred_fallthru
    _
  %v27 = vld [vmem:[%s0] sm:$0xff]
  %v28 = vld [vmem:[%s0 + $0x8] sm:$0xff]
  %v29 = vld [vmem:[%s0 + $0x10] sm:$0xff]
  %v30 = vld [vmem:[%s0 + $0x18] sm:$0xff]
  %v31 = vld [vmem:[%s0 + $0x20] sm:$0xff]
  %v32 = vld [vmem:[%s0 + $0x28] sm:$0xff]
  %v33 = vld [vmem:[%s0 + $0x30] sm:$0xff]
  %v34 = vld [vmem:[%s0 + $0x38] sm:$0xff]
  %v35 = vld [vmem:[%s0 + $0x40] sm:$0xff]
  %v36 = vld [vmem:[%s0 + $0x48] sm:$0xff]
  %v37 = vld [vmem:[%s0 + $0x50] sm:$0xff]
  %v38 = vld [vmem:[%s0 + $0x58] sm:$0xff]
  %v39 = vld [vmem:[%s0 + $0x60] sm:$0xff]
  %v40 = vld [vmem:[%s0 + $0x68] sm:$0xff]
  %v41 = vld [vmem:[%s0 + $0x70] sm:$0xff]
  %v42 = vld [vmem:[%s0 + $0x78] sm:$0xff]
  %v43 = vld [vmem:[%s0 + $0x80] sm:$0xff]
  %v44 = vld [vmem:[%s0 + $0x88] sm:$0xff]
  %v45 = vld [vmem:[%s0 + $0x90] sm:$0xff]
  %v46 = vld [vmem:[%s0 + $0x98] sm:$0xff]
  %v47 = vld [vmem:[%s0 + $0xa0] sm:$0xff]
  %v48 = vld [vmem:[%s0 + $0xa8] sm:$0xff]
  %v49 = vld [vmem:[%s0 + $0xb0] sm:$0xff]
  %v50 = vld [vmem:[%s0 + $0xb8] sm:$0xff]
  %v51 = vld [vmem:[%s0 + $0xc0] sm:$0xff]
  %v52 = vld [vmem:[%s0 + $0xc8] sm:$0xff]
  %v53 = vld [vmem:[%s0 + $0xd0] sm:$0xff]
  %v54 = vld [vmem:[%s0 + $0xd8] sm:$0xff]
  %v55 = vld [vmem:[%s0 + $0xe0] sm:$0xff]
  %v56 = vld [vmem:[%s0 + $0xe8] sm:$0xff]
  %v57 = vld [vmem:[%s0 + $0xf0] sm:$0xff]
  %v58 = vld [vmem:[%s0 + $0xf8] sm:$0xff]
  %v59 = vld [vmem:[%s0 + $0x100] sm:$0xff]
  %v60 = vld [vmem:[%s0 + $0x108] sm:$0xff]
  %v61 = vld [vmem:[%s0 + $0x110] sm:$0xff]
  %v62 = vld [vmem:[%s0 + $0x118] sm:$0xff]
  %v63 = vld [vmem:[%s0 + $0x120] sm:$0xff]
  %v64 = vld [vmem:[%s0 + $0x128] sm:$0xff]
  %v65 = vld [vmem:[%s0 + $0x130] sm:$0xff]
  %v66 = vld [vmem:[%s0 + $0x138] sm:$0xff]
  %v67 = vld [vmem:[%s0 + $0x140] sm:$0xff]
  %v68 = vld [vmem:[%s0 + $0x148] sm:$0xff]
  %v69 = vld [vmem:[%s0 + $0x150] sm:$0xff]
  %v70 = vld [vmem:[%s0 + $0x158] sm:$0xff]
  %v71 = vld [vmem:[%s0 + $0x160] sm:$0xff]
  %v72 = vld [vmem:[%s0 + $0x168] sm:$0xff]
  %v73 = vld [vmem:[%s0 + $0x170] sm:$0xff]
  %v74 = vld [vmem:[%s0 + $0x178] sm:$0xff]
  %v75 = vld [vmem:[%s0 + $0x180] sm:$0xff]
  %v76 = vld [vmem:[%s0 + $0x188] sm:$0xff]
  %v77 = vld [vmem:[%s0 + $0x190] sm:$0xff]
  %v78 = vld [vmem:[%s0 + $0x198] sm:$0xff]
  %v79 = vld [vmem:[%s0 + $0x1a0] sm:$0xff]
  %v80 = vld [vmem:[%s0 + $0x1a8] sm:$0xff]
  %v81 = vld [vmem:[%s0 + $0x1b0] sm:$0xff]
  %v82 = vld [vmem:[%s0 + $0x1b8] sm:$0xff]
  %v83 = vld [vmem:[%s0 + $0x1c0] sm:$0xff]
  %v84 = vld [vmem:[%s0 + $0x1c8] sm:$0xff]
  %v85 = vld [vmem:[%s0 + $0x1d0] sm:$0xff]
  %v86 = vld [vmem:[%s0 + $0x1d8] sm:$0xff]
  %v87 = vld [vmem:[%s0 + $0x1e0] sm:$0xff]
  %v88 = vld [vmem:[%s0 + $0x1e8] sm:$0xff]
  %v89 = vld [vmem:[%s0 + $0x1f0] sm:$0xff]
  %v90 = vld [vmem:[%s0 + $0x1f8] sm:$0xff]
  %v91 = vld [vmem:[%s1] sm:$0xff]
  %v92 = vld [vmem:[%s1 + $0x8] sm:$0xff]
  %v93 = vld [vmem:[%s1 + $0x10] sm:$0xff]
  %v94 = vld [vmem:[%s1 + $0x18] sm:$0xff]
  %v95 = vld [vmem:[%s1 + $0x20] sm:$0xf]
  %v96 = vld [vmem:[%s2] sm:$0x1]
  %v98 = vlaneseq
  %v99 = vshrl.u32 %v98, 7
  %v100 = vsub.s32 0, %v99
  %v101 = vrot.slane %v96, %v100
  %vm103 = vcmask 293888
  %v105 = vsel %vm103, %v27, 0
  %v108 = vsel %vm103, %v28, 0
  %v111 = vsel %vm103, %v29, 0
  %v114 = vsel %vm103, %v30, 0
  %v117 = vsel %vm103, %v31, 0
  %v120 = vsel %vm103, %v32, 0
  %v123 = vsel %vm103, %v33, 0
  %v126 = vsel %vm103, %v34, 0
  %v129 = vsel %vm103, %v35, 0
  %v132 = vsel %vm103, %v36, 0
  %v135 = vsel %vm103, %v37, 0
  %v138 = vsel %vm103, %v38, 0
  %v141 = vsel %vm103, %v39, 0
  %v144 = vsel %vm103, %v40, 0
  %v147 = vsel %vm103, %v41, 0
  %v150 = vsel %vm103, %v42, 0
  %v153 = vsel %vm103, %v43, 0
  %v156 = vsel %vm103, %v44, 0
  %v159 = vsel %vm103, %v45, 0
  %v162 = vsel %vm103, %v46, 0
  %v165 = vsel %vm103, %v47, 0
  %v168 = vsel %vm103, %v48, 0
  %v171 = vsel %vm103, %v49, 0
  %v174 = vsel %vm103, %v50, 0
  %v177 = vsel %vm103, %v51, 0
  %v180 = vsel %vm103, %v52, 0
  %v183 = vsel %vm103, %v53, 0
  %v186 = vsel %vm103, %v54, 0
  %v189 = vsel %vm103, %v55, 0
  %v192 = vsel %vm103, %v56, 0
  %v195 = vsel %vm103, %v57, 0
  %v198 = vsel %vm103, %v58, 0
  %v201 = vsel %vm103, %v59, 0
  %v204 = vsel %vm103, %v60, 0
  %v207 = vsel %vm103, %v61, 0
  %v210 = vsel %vm103, %v62, 0
  %v213 = vsel %vm103, %v63, 0
  %v216 = vsel %vm103, %v64, 0
  %v219 = vsel %vm103, %v65, 0
  %v222 = vsel %vm103, %v66, 0
  %v225 = vsel %vm103, %v67, 0
  %v228 = vsel %vm103, %v68, 0
  %v231 = vsel %vm103, %v69, 0
  %v234 = vsel %vm103, %v70, 0
  %v237 = vsel %vm103, %v71, 0
  %v240 = vsel %vm103, %v72, 0
  %v243 = vsel %vm103, %v73, 0
  %v246 = vsel %vm103, %v74, 0
  %v249 = vsel %vm103, %v75, 0
  %v252 = vsel %vm103, %v76, 0
  %v255 = vsel %vm103, %v77, 0
  %v258 = vsel %vm103, %v78, 0
  %v261 = vsel %vm103, %v79, 0
  %v264 = vsel %vm103, %v80, 0
  %v267 = vsel %vm103, %v81, 0
  %v270 = vsel %vm103, %v82, 0
  %v273 = vsel %vm103, %v83, 0
  %v276 = vsel %vm103, %v84, 0
  %v279 = vsel %vm103, %v85, 0
  %v282 = vsel %vm103, %v86, 0
  %v285 = vsel %vm103, %v87, 0
  %v288 = vsel %vm103, %v88, 0
  %v291 = vsel %vm103, %v89, 0
  %v294 = vsel %vm103, %v90, 0
  %vm296 = vcmask 1043456
  %v298 = vsel %vm296, %v95, 0
  %300 = vmatprep.subr.mxu0 0.0
  %301 = vmatpush1.msra.mxu0 %v91
  %302 = vmatprep.subr.mxu0 0.0
  %303 = vmatpush1.msra.mxu0 %v92
  %304 = vmatprep.subr.mxu0 0.0
  %305 = vmatpush1.msra.mxu0 %v93
  %306 = vmatprep.subr.mxu0 0.0
  %307 = vmatpush1.msra.mxu0 %v94
  %308 = vmatprep.subr.mxu0 0.0
  %309 = vmatpush1.msra.mxu0 %v298
  %310 = vmatprep.subr.mxu0 0.0
  %311 = vmatpush1.msra.mxu0 0.0
  %312 = vmatprep.subr.mxu0 0.0
  %313 = vmatpush1.msra.mxu0 0.0
  %314 = vmatprep.subr.mxu0 0.0
  %315 = vmatpush1.msra.mxu0 0.0
  %316 = vmatprep.subr.mxu0 0.0
  %317 = vmatpush1.msra.mxu0 0.0
  %318 = vmatprep.subr.mxu0 0.0
  %319 = vmatpush1.msra.mxu0 0.0
  %320 = vmatprep.subr.mxu0 0.0
  %321 = vmatpush1.msra.mxu0 0.0
  %322 = vmatprep.subr.mxu0 0.0
  %323 = vmatpush1.msra.mxu0 0.0
  %324 = vmatprep.subr.mxu0 0.0
  %325 = vmatpush1.msra.mxu0 0.0
  %326 = vmatprep.subr.mxu0 0.0
  %327 = vmatpush1.msra.mxu0 0.0
  %328 = vmatprep.subr.mxu0 0.0
  %329 = vmatpush1.msra.mxu0 0.0
  %330 = vmatprep.subr.mxu0 0.0
  %331 = vmatpush1.msra.mxu0 0.0
  %332 = vmatprep.subr.mxu0 0.0
  %333 = vmatpush1.msra.mxu0 0.0
  %334 = vmatprep.subr.mxu0 0.0
  %335 = vmatpush1.msra.mxu0 0.0
  %336 = vmatprep.subr.mxu0 0.0
  %337 = vmatpush1.msra.mxu0 0.0
  %338 = vmatprep.subr.mxu0 0.0
  %339 = vmatpush1.msra.mxu0 0.0
  %340 = vmatprep.subr.mxu0 0.0
  %341 = vmatpush1.msra.mxu0 0.0
  %342 = vmatprep.subr.mxu0 0.0
  %343 = vmatpush1.msra.mxu0 0.0
  %344 = vmatprep.subr.mxu0 0.0
  %345 = vmatpush1.msra.mxu0 0.0
  %346 = vmatprep.subr.mxu0 0.0
  %347 = vmatpush1.msra.mxu0 0.0
  %348 = vmatprep.subr.mxu0 0.0
  %349 = vmatpush1.msra.mxu0 0.0
  %350 = vmatprep.subr.mxu0 0.0
  %351 = vmatpush1.msra.mxu0 0.0
  %352 = vmatprep.subr.mxu0 0.0
  %353 = vmatpush1.msra.mxu0 0.0
  %354 = vmatprep.subr.mxu0 0.0
  %355 = vmatpush1.msra.mxu0 0.0
  %356 = vmatprep.subr.mxu0 0.0
  %357 = vmatpush1.msra.mxu0 0.0
  %358 = vmatprep.subr.mxu0 0.0
  %359 = vmatpush1.msra.mxu0 0.0
  %360 = vmatprep.subr.mxu0 0.0
  %361 = vmatpush1.msra.mxu0 0.0
  %362 = vmatprep.subr.mxu0 0.0
  %363 = vmatpush1.msra.mxu0 0.0
  %364 = vmatprep.mubr.f32.mxu0 0.0
  %365 = vmatmul.mubr.f32.gmra.mrb[0].mxu0 %v105
  %v366 = vpop.f32.mrb[0].mxu0
  %v367 = vadd.f32 %v101, %v366
  %v368 = vpop.f32.mrb[0].mxu0
  %369 = vmatprep.mubr.f32.mxu0 0.0
  %370 = vmatmul.mubr.f32.gmra.mrb[0].mxu0 %v108
  %v371 = vpop.f32.mrb[0].mxu0
  %v372 = vadd.f32 %v101, %v371
  %v373 = vpop.f32.mrb[0].mxu0
  %374 = vmatprep.mubr.f32.mxu0 0.0
  %375 = vmatmul.mubr.f32.gmra.mrb[0].mxu0 %v111
  %v376 = vpop.f32.mrb[0].mxu0
  %v377 = vadd.f32 %v101, %v376
  %v378 = vpop.f32.mrb[0].mxu0
  %379 = vmatprep.mubr.f32.mxu0 0.0
  %380 = vmatmul.mubr.f32.gmra.mrb[0].mxu0 %v114
  %v381 = vpop.f32.mrb[0].mxu0
  %v382 = vadd.f32 %v101, %v381
  %v383 = vpop.f32.mrb[0].mxu0
  %384 = vmatprep.mubr.f32.mxu0 0.0
  %385 = vmatmul.mubr.f32.gmra.mrb[0].mxu0 %v117
  %v386 = vpop.f32.mrb[0].mxu0
  %v387 = vadd.f32 %v101, %v386
  %v388 = vpop.f32.mrb[0].mxu0
  %389 = vmatprep.mubr.f32.mxu0 0.0
  %390 = vmatmul.mubr.f32.gmra.mrb[0].mxu0 %v120
  %v391 = vpop.f32.mrb[0].mxu0
  %v392 = vadd.f32 %v101, %v391
  %v393 = vpop.f32.mrb[0].mxu0
  %394 = vmatprep.mubr.f32.mxu0 0.0
  %395 = vmatmul.mubr.f32.gmra.mrb[0].mxu0 %v123
  %v396 = vpop.f32.mrb[0].mxu0
  %v397 = vadd.f32 %v101, %v396
  %v398 = vpop.f32.mrb[0].mxu0
  %399 = vmatprep.mubr.f32.mxu0 0.0
  %400 = vmatmul.mubr.f32.gmra.mrb[0].mxu0 %v126
  %v401 = vpop.f32.mrb[0].mxu0
  %v402 = vadd.f32 %v101, %v401
  %v403 = vpop.f32.mrb[0].mxu0
  %404 = vmatprep.mubr.f32.mxu0 0.0
  %405 = vmatmul.mubr.f32.gmra.mrb[0].mxu0 %v129
  %v406 = vpop.f32.mrb[0].mxu0
  %v407 = vadd.f32 %v101, %v406
  %v408 = vpop.f32.mrb[0].mxu0
  %409 = vmatprep.mubr.f32.mxu0 0.0
  %410 = vmatmul.mubr.f32.gmra.mrb[0].mxu0 %v132
  %v411 = vpop.f32.mrb[0].mxu0
  %v412 = vadd.f32 %v101, %v411
  %v413 = vpop.f32.mrb[0].mxu0
  %414 = vmatprep.mubr.f32.mxu0 0.0
  %415 = vmatmul.mubr.f32.gmra.mrb[0].mxu0 %v135
  %v416 = vpop.f32.mrb[0].mxu0
  %v417 = vadd.f32 %v101, %v416
  %v418 = vpop.f32.mrb[0].mxu0
  %419 = vmatprep.mubr.f32.mxu0 0.0
  %420 = vmatmul.mubr.f32.gmra.mrb[0].mxu0 %v138
  %v421 = vpop.f32.mrb[0].mxu0
  %v422 = vadd.f32 %v101, %v421
  %v423 = vpop.f32.mrb[0].mxu0
  %424 = vmatprep.mubr.f32.mxu0 0.0
  %425 = vmatmul.mubr.f32.gmra.mrb[0].mxu0 %v141
  %v426 = vpop.f32.mrb[0].mxu0
  %v427 = vadd.f32 %v101, %v426
  %v428 = vpop.f32.mrb[0].mxu0
  %429 = vmatprep.mubr.f32.mxu0 0.0
  %430 = vmatmul.mubr.f32.gmra.mrb[0].mxu0 %v144
  %v431 = vpop.f32.mrb[0].mxu0
  %v432 = vadd.f32 %v101, %v431
  %v433 = vpop.f32.mrb[0].mxu0
  %434 = vmatprep.mubr.f32.mxu0 0.0
  %435 = vmatmul.mubr.f32.gmra.mrb[0].mxu0 %v147
  %v436 = vpop.f32.mrb[0].mxu0
  %v437 = vadd.f32 %v101, %v436
  %v438 = vpop.f32.mrb[0].mxu0
  %439 = vmatprep.mubr.f32.mxu0 0.0
  %440 = vmatmul.mubr.f32.gmra.mrb[0].mxu0 %v150
  %v441 = vpop.f32.mrb[0].mxu0
  %v442 = vadd.f32 %v101, %v441
  %v443 = vpop.f32.mrb[0].mxu0
  %444 = vmatprep.mubr.f32.mxu0 0.0
  %445 = vmatmul.mubr.f32.gmra.mrb[0].mxu0 %v153
  %v446 = vpop.f32.mrb[0].mxu0
  %v447 = vadd.f32 %v101, %v446
  %v448 = vpop.f32.mrb[0].mxu0
  %449 = vmatprep.mubr.f32.mxu0 0.0
  %450 = vmatmul.mubr.f32.gmra.mrb[0].mxu0 %v156
  %v451 = vpop.f32.mrb[0].mxu0
  %v452 = vadd.f32 %v101, %v451
  %v453 = vpop.f32.mrb[0].mxu0
  %454 = vmatprep.mubr.f32.mxu0 0.0
  %455 = vmatmul.mubr.f32.gmra.mrb[0].mxu0 %v159
  %v456 = vpop.f32.mrb[0].mxu0
  %v457 = vadd.f32 %v101, %v456
  %v458 = vpop.f32.mrb[0].mxu0
  %459 = vmatprep.mubr.f32.mxu0 0.0
  %460 = vmatmul.mubr.f32.gmra.mrb[0].mxu0 %v162
  %v461 = vpop.f32.mrb[0].mxu0
  %v462 = vadd.f32 %v101, %v461
  %v463 = vpop.f32.mrb[0].mxu0
  %464 = vmatprep.mubr.f32.mxu0 0.0
  %465 = vmatmul.mubr.f32.gmra.mrb[0].mxu0 %v165
  %v466 = vpop.f32.mrb[0].mxu0
  %v467 = vadd.f32 %v101, %v466
  %v468 = vpop.f32.mrb[0].mxu0
  %469 = vmatprep.mubr.f32.mxu0 0.0
  %470 = vmatmul.mubr.f32.gmra.mrb[0].mxu0 %v168
  %v471 = vpop.f32.mrb[0].mxu0
  %v472 = vadd.f32 %v101, %v471
  %v473 = vpop.f32.mrb[0].mxu0
  %474 = vmatprep.mubr.f32.mxu0 0.0
  %475 = vmatmul.mubr.f32.gmra.mrb[0].mxu0 %v171
  %v476 = vpop.f32.mrb[0].mxu0
  %v477 = vadd.f32 %v101, %v476
  %v478 = vpop.f32.mrb[0].mxu0
  %479 = vmatprep.mubr.f32.mxu0 0.0
  %480 = vmatmul.mubr.f32.gmra.mrb[0].mxu0 %v174
  %v481 = vpop.f32.mrb[0].mxu0
  %v482 = vadd.f32 %v101, %v481
  %v483 = vpop.f32.mrb[0].mxu0
  %484 = vmatprep.mubr.f32.mxu0 0.0
  %485 = vmatmul.mubr.f32.gmra.mrb[0].mxu0 %v177
  %v486 = vpop.f32.mrb[0].mxu0
  %v487 = vadd.f32 %v101, %v486
  %v488 = vpop.f32.mrb[0].mxu0
  %489 = vmatprep.mubr.f32.mxu0 0.0
  %490 = vmatmul.mubr.f32.gmra.mrb[0].mxu0 %v180
  %v491 = vpop.f32.mrb[0].mxu0
  %v492 = vadd.f32 %v101, %v491
  %v493 = vpop.f32.mrb[0].mxu0
  %494 = vmatprep.mubr.f32.mxu0 0.0
  %495 = vmatmul.mubr.f32.gmra.mrb[0].mxu0 %v183
  %v496 = vpop.f32.mrb[0].mxu0
  %v497 = vadd.f32 %v101, %v496
  %v498 = vpop.f32.mrb[0].mxu0
  %499 = vmatprep.mubr.f32.mxu0 0.0
  %500 = vmatmul.mubr.f32.gmra.mrb[0].mxu0 %v186
  %v501 = vpop.f32.mrb[0].mxu0
  %v502 = vadd.f32 %v101, %v501
  %v503 = vpop.f32.mrb[0].mxu0
  %504 = vmatprep.mubr.f32.mxu0 0.0
  %505 = vmatmul.mubr.f32.gmra.mrb[0].mxu0 %v189
  %v506 = vpop.f32.mrb[0].mxu0
  %v507 = vadd.f32 %v101, %v506
  %v508 = vpop.f32.mrb[0].mxu0
  %509 = vmatprep.mubr.f32.mxu0 0.0
  %510 = vmatmul.mubr.f32.gmra.mrb[0].mxu0 %v192
  %v511 = vpop.f32.mrb[0].mxu0
  %v512 = vadd.f32 %v101, %v511
  %v513 = vpop.f32.mrb[0].mxu0
  %514 = vmatprep.mubr.f32.mxu0 0.0
  %515 = vmatmul.mubr.f32.gmra.mrb[0].mxu0 %v195
  %v516 = vpop.f32.mrb[0].mxu0
  %v517 = vadd.f32 %v101, %v516
  %v518 = vpop.f32.mrb[0].mxu0
  %519 = vmatprep.mubr.f32.mxu0 0.0
  %520 = vmatmul.mubr.f32.gmra.mrb[0].mxu0 %v198
  %v521 = vpop.f32.mrb[0].mxu0
  %v522 = vadd.f32 %v101, %v521
  %v523 = vpop.f32.mrb[0].mxu0
  %524 = vmatprep.mubr.f32.mxu0 0.0
  %525 = vmatmul.mubr.f32.gmra.mrb[0].mxu0 %v201
  %v526 = vpop.f32.mrb[0].mxu0
  %v527 = vadd.f32 %v101, %v526
  %v528 = vpop.f32.mrb[0].mxu0
  %529 = vmatprep.mubr.f32.mxu0 0.0
  %530 = vmatmul.mubr.f32.gmra.mrb[0].mxu0 %v204
  %v531 = vpop.f32.mrb[0].mxu0
  %v532 = vadd.f32 %v101, %v531
  %v533 = vpop.f32.mrb[0].mxu0
  %534 = vmatprep.mubr.f32.mxu0 0.0
  %535 = vmatmul.mubr.f32.gmra.mrb[0].mxu0 %v207
  %v536 = vpop.f32.mrb[0].mxu0
  %v537 = vadd.f32 %v101, %v536
  %v538 = vpop.f32.mrb[0].mxu0
  %539 = vmatprep.mubr.f32.mxu0 0.0
  %540 = vmatmul.mubr.f32.gmra.mrb[0].mxu0 %v210
  %v541 = vpop.f32.mrb[0].mxu0
  %v542 = vadd.f32 %v101, %v541
  %v543 = vpop.f32.mrb[0].mxu0
  %544 = vmatprep.mubr.f32.mxu0 0.0
  %545 = vmatmul.mubr.f32.gmra.mrb[0].mxu0 %v213
  %v546 = vpop.f32.mrb[0].mxu0
  %v547 = vadd.f32 %v101, %v546
  %v548 = vpop.f32.mrb[0].mxu0
  %549 = vmatprep.mubr.f32.mxu0 0.0
  %550 = vmatmul.mubr.f32.gmra.mrb[0].mxu0 %v216
  %v551 = vpop.f32.mrb[0].mxu0
  %v552 = vadd.f32 %v101, %v551
  %v553 = vpop.f32.mrb[0].mxu0
  %554 = vmatprep.mubr.f32.mxu0 0.0
  %555 = vmatmul.mubr.f32.gmra.mrb[0].mxu0 %v219
  %v556 = vpop.f32.mrb[0].mxu0
  %v557 = vadd.f32 %v101, %v556
  %v558 = vpop.f32.mrb[0].mxu0
  %559 = vmatprep.mubr.f32.mxu0 0.0
  %560 = vmatmul.mubr.f32.gmra.mrb[0].mxu0 %v222
  %v561 = vpop.f32.mrb[0].mxu0
  %v562 = vadd.f32 %v101, %v561
  %v563 = vpop.f32.mrb[0].mxu0
  %564 = vmatprep.mubr.f32.mxu0 0.0
  %565 = vmatmul.mubr.f32.gmra.mrb[0].mxu0 %v225
  %v566 = vpop.f32.mrb[0].mxu0
  %v567 = vadd.f32 %v101, %v566
  %v568 = vpop.f32.mrb[0].mxu0
  %569 = vmatprep.mubr.f32.mxu0 0.0
  %570 = vmatmul.mubr.f32.gmra.mrb[0].mxu0 %v228
  %v571 = vpop.f32.mrb[0].mxu0
  %v572 = vadd.f32 %v101, %v571
  %v573 = vpop.f32.mrb[0].mxu0
  %574 = vmatprep.mubr.f32.mxu0 0.0
  %575 = vmatmul.mubr.f32.gmra.mrb[0].mxu0 %v231
  %v576 = vpop.f32.mrb[0].mxu0
  %v577 = vadd.f32 %v101, %v576
  %v578 = vpop.f32.mrb[0].mxu0
  %579 = vmatprep.mubr.f32.mxu0 0.0
  %580 = vmatmul.mubr.f32.gmra.mrb[0].mxu0 %v234
  %v581 = vpop.f32.mrb[0].mxu0
  %v582 = vadd.f32 %v101, %v581
  %v583 = vpop.f32.mrb[0].mxu0
  %584 = vmatprep.mubr.f32.mxu0 0.0
  %585 = vmatmul.mubr.f32.gmra.mrb[0].mxu0 %v237
  %v586 = vpop.f32.mrb[0].mxu0
  %v587 = vadd.f32 %v101, %v586
  %v588 = vpop.f32.mrb[0].mxu0
  %589 = vmatprep.mubr.f32.mxu0 0.0
  %590 = vmatmul.mubr.f32.gmra.mrb[0].mxu0 %v240
  %v591 = vpop.f32.mrb[0].mxu0
  %v592 = vadd.f32 %v101, %v591
  %v593 = vpop.f32.mrb[0].mxu0
  %594 = vmatprep.mubr.f32.mxu0 0.0
  %595 = vmatmul.mubr.f32.gmra.mrb[0].mxu0 %v243
  %v596 = vpop.f32.mrb[0].mxu0
  %v597 = vadd.f32 %v101, %v596
  %v598 = vpop.f32.mrb[0].mxu0
  %599 = vmatprep.mubr.f32.mxu0 0.0
  %600 = vmatmul.mubr.f32.gmra.mrb[0].mxu0 %v246
  %v601 = vpop.f32.mrb[0].mxu0
  %v602 = vadd.f32 %v101, %v601
  %v603 = vpop.f32.mrb[0].mxu0
  %604 = vmatprep.mubr.f32.mxu0 0.0
  %605 = vmatmul.mubr.f32.gmra.mrb[0].mxu0 %v249
  %v606 = vpop.f32.mrb[0].mxu0
  %v607 = vadd.f32 %v101, %v606
  %v608 = vpop.f32.mrb[0].mxu0
  %609 = vmatprep.mubr.f32.mxu0 0.0
  %610 = vmatmul.mubr.f32.gmra.mrb[0].mxu0 %v252
  %v611 = vpop.f32.mrb[0].mxu0
  %v612 = vadd.f32 %v101, %v611
  %v613 = vpop.f32.mrb[0].mxu0
  %614 = vmatprep.mubr.f32.mxu0 0.0
  %615 = vmatmul.mubr.f32.gmra.mrb[0].mxu0 %v255
  %v616 = vpop.f32.mrb[0].mxu0
  %v617 = vadd.f32 %v101, %v616
  %v618 = vpop.f32.mrb[0].mxu0
  %619 = vmatprep.mubr.f32.mxu0 0.0
  %620 = vmatmul.mubr.f32.gmra.mrb[0].mxu0 %v258
  %v621 = vpop.f32.mrb[0].mxu0
  %v622 = vadd.f32 %v101, %v621
  %v623 = vpop.f32.mrb[0].mxu0
  %624 = vmatprep.mubr.f32.mxu0 0.0
  %625 = vmatmul.mubr.f32.gmra.mrb[0].mxu0 %v261
  %v626 = vpop.f32.mrb[0].mxu0
  %v627 = vadd.f32 %v101, %v626
  %v628 = vpop.f32.mrb[0].mxu0
  %629 = vmatprep.mubr.f32.mxu0 0.0
  %630 = vmatmul.mubr.f32.gmra.mrb[0].mxu0 %v264
  %v631 = vpop.f32.mrb[0].mxu0
  %v632 = vadd.f32 %v101, %v631
  %v633 = vpop.f32.mrb[0].mxu0
  %634 = vmatprep.mubr.f32.mxu0 0.0
  %635 = vmatmul.mubr.f32.gmra.mrb[0].mxu0 %v267
  %v636 = vpop.f32.mrb[0].mxu0
  %v637 = vadd.f32 %v101, %v636
  %v638 = vpop.f32.mrb[0].mxu0
  %639 = vmatprep.mubr.f32.mxu0 0.0
  %640 = vmatmul.mubr.f32.gmra.mrb[0].mxu0 %v270
  %v641 = vpop.f32.mrb[0].mxu0
  %v642 = vadd.f32 %v101, %v641
  %v643 = vpop.f32.mrb[0].mxu0
  %644 = vmatprep.mubr.f32.mxu0 0.0
  %645 = vmatmul.mubr.f32.gmra.mrb[0].mxu0 %v273
  %v646 = vpop.f32.mrb[0].mxu0
  %v647 = vadd.f32 %v101, %v646
  %v648 = vpop.f32.mrb[0].mxu0
  %649 = vmatprep.mubr.f32.mxu0 0.0
  %650 = vmatmul.mubr.f32.gmra.mrb[0].mxu0 %v276
  %v651 = vpop.f32.mrb[0].mxu0
  %v652 = vadd.f32 %v101, %v651
  %v653 = vpop.f32.mrb[0].mxu0
  %654 = vmatprep.mubr.f32.mxu0 0.0
  %655 = vmatmul.mubr.f32.gmra.mrb[0].mxu0 %v279
  %v656 = vpop.f32.mrb[0].mxu0
  %v657 = vadd.f32 %v101, %v656
  %v658 = vpop.f32.mrb[0].mxu0
  %659 = vmatprep.mubr.f32.mxu0 0.0
  %660 = vmatmul.mubr.f32.gmra.mrb[0].mxu0 %v282
  %v661 = vpop.f32.mrb[0].mxu0
  %v662 = vadd.f32 %v101, %v661
  %v663 = vpop.f32.mrb[0].mxu0
  %664 = vmatprep.mubr.f32.mxu0 0.0
  %665 = vmatmul.mubr.f32.gmra.mrb[0].mxu0 %v285
  %v666 = vpop.f32.mrb[0].mxu0
  %v667 = vadd.f32 %v101, %v666
  %v668 = vpop.f32.mrb[0].mxu0
  %669 = vmatprep.mubr.f32.mxu0 0.0
  %670 = vmatmul.mubr.f32.gmra.mrb[0].mxu0 %v288
  %v671 = vpop.f32.mrb[0].mxu0
  %v672 = vadd.f32 %v101, %v671
  %v673 = vpop.f32.mrb[0].mxu0
  %674 = vmatprep.mubr.f32.mxu0 0.0
  %675 = vmatmul.mubr.f32.gmra.mrb[0].mxu0 %v291
  %v676 = vpop.f32.mrb[0].mxu0
  %v677 = vadd.f32 %v101, %v676
  %v678 = vpop.f32.mrb[0].mxu0
  %679 = vmatprep.mubr.f32.mxu0 0.0
  %680 = vmatmul.mubr.f32.gmra.mrb[0].mxu0 %v294
  %v681 = vpop.f32.mrb[0].mxu0
  %v682 = vadd.f32 %v101, %v681
  %v683 = vpop.f32.mrb[0].mxu0
  %684 = vdwg.mxu0
  %v685 = vmax.f32 %v367, 0.0
  %v686 = vmax.f32 %v372, 0.0
  %v687 = vmax.f32 %v377, 0.0
  %v688 = vmax.f32 %v382, 0.0
  %v689 = vmax.f32 %v387, 0.0
  %v690 = vmax.f32 %v392, 0.0
  %v691 = vmax.f32 %v397, 0.0
  %v692 = vmax.f32 %v402, 0.0
  %v693 = vmax.f32 %v407, 0.0
  %v694 = vmax.f32 %v412, 0.0
  %v695 = vmax.f32 %v417, 0.0
  %v696 = vmax.f32 %v422, 0.0
  %v697 = vmax.f32 %v427, 0.0
  %v698 = vmax.f32 %v432, 0.0
  %v699 = vmax.f32 %v437, 0.0
  %v700 = vmax.f32 %v442, 0.0
  %v701 = vmax.f32 %v447, 0.0
  %v702 = vmax.f32 %v452, 0.0
  %v703 = vmax.f32 %v457, 0.0
  %v704 = vmax.f32 %v462, 0.0
  %v705 = vmax.f32 %v467, 0.0
  %v706 = vmax.f32 %v472, 0.0
  %v707 = vmax.f32 %v477, 0.0
  %v708 = vmax.f32 %v482, 0.0
  %v709 = vmax.f32 %v487, 0.0
  %v710 = vmax.f32 %v492, 0.0
  %v711 = vmax.f32 %v497, 0.0
  %v712 = vmax.f32 %v502, 0.0
  %v713 = vmax.f32 %v507, 0.0
  %v714 = vmax.f32 %v512, 0.0
  %v715 = vmax.f32 %v517, 0.0
  %v716 = vmax.f32 %v522, 0.0
  %v717 = vmax.f32 %v527, 0.0
  %v718 = vmax.f32 %v532, 0.0
  %v719 = vmax.f32 %v537, 0.0
  %v720 = vmax.f32 %v542, 0.0
  %v721 = vmax.f32 %v547, 0.0
  %v722 = vmax.f32 %v552, 0.0
  %v723 = vmax.f32 %v557, 0.0
  %v724 = vmax.f32 %v562, 0.0
  %v725 = vmax.f32 %v567, 0.0
  %v726 = vmax.f32 %v572, 0.0
  %v727 = vmax.f32 %v577, 0.0
  %v728 = vmax.f32 %v582, 0.0
  %v729 = vmax.f32 %v587, 0.0
  %v730 = vmax.f32 %v592, 0.0
  %v731 = vmax.f32 %v597, 0.0
  %v732 = vmax.f32 %v602, 0.0
  %v733 = vmax.f32 %v607, 0.0
  %v734 = vmax.f32 %v612, 0.0
  %v735 = vmax.f32 %v617, 0.0
  %v736 = vmax.f32 %v622, 0.0
  %v737 = vmax.f32 %v627, 0.0
  %v738 = vmax.f32 %v632, 0.0
  %v739 = vmax.f32 %v637, 0.0
  %v740 = vmax.f32 %v642, 0.0
  %v741 = vmax.f32 %v647, 0.0
  %v742 = vmax.f32 %v652, 0.0
  %v743 = vmax.f32 %v657, 0.0
  %v744 = vmax.f32 %v662, 0.0
  %v745 = vmax.f32 %v667, 0.0
  %v746 = vmax.f32 %v672, 0.0
  %v747 = vmax.f32 %v677, 0.0
  %v748 = vmax.f32 %v682, 0.0
  %vm749 = vcmask 261120
  %v750 = vsel %vm749, %v685, 0.0
  %v751 = vsel %vm749, %v686, 0.0
  %v752 = vadd.f32 %v750, %v751
  %v753 = vsel %vm749, %v687, 0.0
  %v754 = vadd.f32 %v752, %v753
  %v755 = vsel %vm749, %v688, 0.0
  %v756 = vadd.f32 %v754, %v755
  %v757 = vsel %vm749, %v689, 0.0
  %v758 = vadd.f32 %v756, %v757
  %v759 = vsel %vm749, %v690, 0.0
  %v760 = vadd.f32 %v758, %v759
  %v761 = vsel %vm749, %v691, 0.0
  %v762 = vadd.f32 %v760, %v761
  %v763 = vsel %vm749, %v692, 0.0
  %v764 = vadd.f32 %v762, %v763
  %v765 = vsel %vm749, %v693, 0.0
  %v766 = vadd.f32 %v764, %v765
  %v767 = vsel %vm749, %v694, 0.0
  %v768 = vadd.f32 %v766, %v767
  %v769 = vsel %vm749, %v695, 0.0
  %v770 = vadd.f32 %v768, %v769
  %v771 = vsel %vm749, %v696, 0.0
  %v772 = vadd.f32 %v770, %v771
  %v773 = vsel %vm749, %v697, 0.0
  %v774 = vadd.f32 %v772, %v773
  %v775 = vsel %vm749, %v698, 0.0
  %v776 = vadd.f32 %v774, %v775
  %v777 = vsel %vm749, %v699, 0.0
  %v778 = vadd.f32 %v776, %v777
  %v779 = vsel %vm749, %v700, 0.0
  %v780 = vadd.f32 %v778, %v779
  %v781 = vsel %vm749, %v701, 0.0
  %v782 = vadd.f32 %v780, %v781
  %v783 = vsel %vm749, %v702, 0.0
  %v784 = vadd.f32 %v782, %v783
  %v785 = vsel %vm749, %v703, 0.0
  %v786 = vadd.f32 %v784, %v785
  %v787 = vsel %vm749, %v704, 0.0
  %v788 = vadd.f32 %v786, %v787
  %v789 = vsel %vm749, %v705, 0.0
  %v790 = vadd.f32 %v788, %v789
  %v791 = vsel %vm749, %v706, 0.0
  %v792 = vadd.f32 %v790, %v791
  %v793 = vsel %vm749, %v707, 0.0
  %v794 = vadd.f32 %v792, %v793
  %v795 = vsel %vm749, %v708, 0.0
  %v796 = vadd.f32 %v794, %v795
  %v797 = vsel %vm749, %v709, 0.0
  %v798 = vadd.f32 %v796, %v797
  %v799 = vsel %vm749, %v710, 0.0
  %v800 = vadd.f32 %v798, %v799
  %v801 = vsel %vm749, %v711, 0.0
  %v802 = vadd.f32 %v800, %v801
  %v803 = vsel %vm749, %v712, 0.0
  %v804 = vadd.f32 %v802, %v803
  %v805 = vsel %vm749, %v713, 0.0
  %v806 = vadd.f32 %v804, %v805
  %v807 = vsel %vm749, %v714, 0.0
  %v808 = vadd.f32 %v806, %v807
  %v809 = vsel %vm749, %v715, 0.0
  %v810 = vadd.f32 %v808, %v809
  %v811 = vsel %vm749, %v716, 0.0
  %v812 = vadd.f32 %v810, %v811
  %v813 = vrot.slane %v812, 4
  %v814 = vadd.f32 %v812, %v813
  %v815 = vrot.slane %v814, 2
  %v816 = vadd.f32 %v814, %v815
  %v817 = vrot.slane %v816, 1
  %v818 = vadd.f32 %v816, %v817
  %v819 = vsel %vm749, %v717, 0.0
  %v820 = vsel %vm749, %v718, 0.0
  %v821 = vadd.f32 %v819, %v820
  %v822 = vsel %vm749, %v719, 0.0
  %v823 = vadd.f32 %v821, %v822
  %v824 = vsel %vm749, %v720, 0.0
  %v825 = vadd.f32 %v823, %v824
  %v826 = vsel %vm749, %v721, 0.0
  %v827 = vadd.f32 %v825, %v826
  %v828 = vsel %vm749, %v722, 0.0
  %v829 = vadd.f32 %v827, %v828
  %v830 = vsel %vm749, %v723, 0.0
  %v831 = vadd.f32 %v829, %v830
  %v832 = vsel %vm749, %v724, 0.0
  %v833 = vadd.f32 %v831, %v832
  %v834 = vsel %vm749, %v725, 0.0
  %v835 = vadd.f32 %v833, %v834
  %v836 = vsel %vm749, %v726, 0.0
  %v837 = vadd.f32 %v835, %v836
  %v838 = vsel %vm749, %v727, 0.0
  %v839 = vadd.f32 %v837, %v838
  %v840 = vsel %vm749, %v728, 0.0
  %v841 = vadd.f32 %v839, %v840
  %v842 = vsel %vm749, %v729, 0.0
  %v843 = vadd.f32 %v841, %v842
  %v844 = vsel %vm749, %v730, 0.0
  %v845 = vadd.f32 %v843, %v844
  %v846 = vsel %vm749, %v731, 0.0
  %v847 = vadd.f32 %v845, %v846
  %v848 = vsel %vm749, %v732, 0.0
  %v849 = vadd.f32 %v847, %v848
  %v850 = vsel %vm749, %v733, 0.0
  %v851 = vadd.f32 %v849, %v850
  %v852 = vsel %vm749, %v734, 0.0
  %v853 = vadd.f32 %v851, %v852
  %v854 = vsel %vm749, %v735, 0.0
  %v855 = vadd.f32 %v853, %v854
  %v856 = vsel %vm749, %v736, 0.0
  %v857 = vadd.f32 %v855, %v856
  %v858 = vsel %vm749, %v737, 0.0
  %v859 = vadd.f32 %v857, %v858
  %v860 = vsel %vm749, %v738, 0.0
  %v861 = vadd.f32 %v859, %v860
  %v862 = vsel %vm749, %v739, 0.0
  %v863 = vadd.f32 %v861, %v862
  %v864 = vsel %vm749, %v740, 0.0
  %v865 = vadd.f32 %v863, %v864
  %v866 = vsel %vm749, %v741, 0.0
  %v867 = vadd.f32 %v865, %v866
  %v868 = vsel %vm749, %v742, 0.0
  %v869 = vadd.f32 %v867, %v868
  %v870 = vsel %vm749, %v743, 0.0
  %v871 = vadd.f32 %v869, %v870
  %v872 = vsel %vm749, %v744, 0.0
  %v873 = vadd.f32 %v871, %v872
  %v874 = vsel %vm749, %v745, 0.0
  %v875 = vadd.f32 %v873, %v874
  %v876 = vsel %vm749, %v746, 0.0
  %v877 = vadd.f32 %v875, %v876
  %v878 = vsel %vm749, %v747, 0.0
  %v879 = vadd.f32 %v877, %v878
  %v880 = vsel %vm749, %v748, 0.0
  %v881 = vadd.f32 %v879, %v880
  %v882 = vrot.slane %v881, 4
  %v883 = vadd.f32 %v881, %v882
  %v884 = vrot.slane %v883, 2
  %v885 = vadd.f32 %v883, %v884
  %v886 = vrot.slane %v885, 1
  %v887 = vadd.f32 %v885, %v886
  %vm890 = vcmask 1041409
  %v891 = vsel %vm890, %v887, %v818
  %vm893 = vcmask 1041408
  %v894 = vsel %vm893, %v891, 0.0
  %v895 = vpack.c.bf16 %v894, %v894
  %v896 = vld [vmem:[%s3] sm:$0xff]
  %v897 = vld [vmem:[%s3 + $0x8] sm:$0xff]
  %v898 = vld [vmem:[%s3 + $0x10] sm:$0xff]
  %v899 = vld [vmem:[%s3 + $0x18] sm:$0xff]
  %v900 = vld [vmem:[%s3 + $0x20] sm:$0xff]
  %v901 = vld [vmem:[%s3 + $0x28] sm:$0xff]
  %v902 = vld [vmem:[%s3 + $0x30] sm:$0xff]
  %v903 = vld [vmem:[%s3 + $0x38] sm:$0xff]
  %v904 = vld [vmem:[%s3 + $0x40] sm:$0xff]
  %v905 = vld [vmem:[%s3 + $0x48] sm:$0xff]
  %v906 = vld [vmem:[%s3 + $0x50] sm:$0xff]
  %v907 = vld [vmem:[%s3 + $0x58] sm:$0xff]
  %v908 = vld [vmem:[%s3 + $0x60] sm:$0xff]
  %v909 = vld [vmem:[%s3 + $0x68] sm:$0xff]
  %v910 = vld [vmem:[%s3 + $0x70] sm:$0xff]
  %v911 = vld [vmem:[%s3 + $0x78] sm:$0xff]
  %v912 = vld [vmem:[%s3 + $0x80] sm:$0xff]
  %v913 = vld [vmem:[%s3 + $0x88] sm:$0xff]
  %v914 = vld [vmem:[%s3 + $0x90] sm:$0xff]
  %v915 = vld [vmem:[%s3 + $0x98] sm:$0xff]
  %v916 = vld [vmem:[%s4] sm:$0xff]
  %v917 = vld [vmem:[%s4 + $0x8] sm:$0x3]
  %v920 = vlaneseq
  %v921 = vshrl.u32 %v920, 7
  %v922 = vsub.s32 0, %v921
  %v923 = vrot.slane %v916, %v922
  %v924 = vlaneseq
  %v925 = vshrl.u32 %v924, 7
  %v926 = vsub.s32 1, %v925
  %v927 = vrot.slane %v916, %v926
  %v928 = vlaneseq
  %v929 = vshrl.u32 %v928, 7
  %v930 = vsub.s32 2, %v929
  %v931 = vrot.slane %v916, %v930
  %v932 = vlaneseq
  %v933 = vshrl.u32 %v932, 7
  %v934 = vsub.s32 3, %v933
  %v935 = vrot.slane %v916, %v934
  %v936 = vlaneseq
  %v937 = vshrl.u32 %v936, 7
  %v938 = vsub.s32 4, %v937
  %v939 = vrot.slane %v916, %v938
  %v940 = vlaneseq
  %v941 = vshrl.u32 %v940, 7
  %v942 = vsub.s32 5, %v941
  %v943 = vrot.slane %v916, %v942
  %v944 = vlaneseq
  %v945 = vshrl.u32 %v944, 7
  %v946 = vsub.s32 6, %v945
  %v947 = vrot.slane %v916, %v946
  %v948 = vlaneseq
  %v949 = vshrl.u32 %v948, 7
  %v950 = vsub.s32 7, %v949
  %v951 = vrot.slane %v916, %v950
  %v952 = vlaneseq
  %v953 = vshrl.u32 %v952, 7
  %v954 = vsub.s32 0, %v953
  %v955 = vrot.slane %v917, %v954
  %v956 = vlaneseq
  %v957 = vshrl.u32 %v956, 7
  %v958 = vsub.s32 1, %v957
  %v959 = vrot.slane %v917, %v958
  %v990 = vunpack.c.l.b16 %v896
  %v991 = vunpack.c.h.b16 %v896
  %v992 = vunpack.c.l.b16 %v897
  %v993 = vunpack.c.h.b16 %v897
  %v994 = vunpack.c.l.b16 %v898
  %v995 = vunpack.c.h.b16 %v898
  %v996 = vunpack.c.l.b16 %v899
  %v997 = vunpack.c.h.b16 %v899
  %v998 = vunpack.c.l.b16 %v900
  %v999 = vunpack.c.h.b16 %v900
  %v1000 = vunpack.c.l.b16 %v901
  %v1001 = vunpack.c.h.b16 %v901
  %v1002 = vunpack.c.l.b16 %v902
  %v1003 = vunpack.c.h.b16 %v902
  %v1004 = vunpack.c.l.b16 %v903
  %v1005 = vunpack.c.h.b16 %v903
  %v1006 = vunpack.c.l.b16 %v904
  %v1007 = vunpack.c.h.b16 %v904
  %v1008 = vunpack.c.l.b16 %v905
  %v1009 = vunpack.c.h.b16 %v905
  %v1010 = vunpack.c.l.b16 %v906
  %v1011 = vunpack.c.h.b16 %v906
  %v1012 = vunpack.c.l.b16 %v907
  %v1013 = vunpack.c.h.b16 %v907
  %v1014 = vunpack.c.l.b16 %v908
  %v1015 = vunpack.c.h.b16 %v908
  %v1016 = vunpack.c.l.b16 %v909
  %v1017 = vunpack.c.h.b16 %v909
  %v1018 = vunpack.c.l.b16 %v910
  %v1019 = vunpack.c.h.b16 %v910
  %v1020 = vunpack.c.l.b16 %v911
  %v1021 = vunpack.c.h.b16 %v911
  %v1022 = vunpack.c.l.b16 %v912
  %v1023 = vunpack.c.h.b16 %v912
  %v1024 = vunpack.c.l.b16 %v913
  %v1025 = vunpack.c.h.b16 %v913
  %v1026 = vunpack.c.l.b16 %v914
  %v1027 = vunpack.c.h.b16 %v914
  %v1028 = vunpack.c.l.b16 %v915
  %v1029 = vunpack.c.h.b16 %v915
  %v1030 = vpack.c.b16 %v1000, %v990
  %v1031 = vpack.c.b16 %v1001, %v991
  %v1032 = vpack.c.b16 %v1002, %v992
  %v1033 = vpack.c.b16 %v1003, %v993
  %v1034 = vpack.c.b16 %v1004, %v994
  %v1035 = vpack.c.b16 %v1005, %v995
  %v1036 = vpack.c.b16 %v1006, %v996
  %v1037 = vpack.c.b16 %v1007, %v997
  %v1038 = vpack.c.b16 %v1008, %v998
  %v1039 = vpack.c.b16 %v1009, %v999
  %v1040 = vpack.c.b16 %v1020, %v1010
  %v1041 = vpack.c.b16 %v1021, %v1011
  %v1042 = vpack.c.b16 %v1022, %v1012
  %v1043 = vpack.c.b16 %v1023, %v1013
  %v1044 = vpack.c.b16 %v1024, %v1014
  %v1045 = vpack.c.b16 %v1025, %v1015
  %v1046 = vpack.c.b16 %v1026, %v1016
  %v1047 = vpack.c.b16 %v1027, %v1017
  %v1048 = vpack.c.b16 %v1028, %v1018
  %v1049 = vpack.c.b16 %v1029, %v1019
  %v1071 = vsel %vm749, %v895, 0
  %1073 = vmatprep.subr.bf16.mxu0 %v1031
  %1074 = vmatpush1.bf16.msra.mxu0 %v1030
  %1075 = vmatprep.subr.bf16.mxu0 %v1041
  %1076 = vmatpush1.bf16.msra.mxu0 %v1040
  %1077 = vmatprep.subr.bf16.mxu0 0
  %1078 = vmatpush1.bf16.msra.mxu0 0
  %1079 = vmatprep.subr.bf16.mxu0 0
  %1080 = vmatpush1.bf16.msra.mxu0 0
  %1081 = vmatprep.subr.bf16.mxu0 0
  %1082 = vmatpush1.bf16.msra.mxu0 0
  %1083 = vmatprep.subr.bf16.mxu0 0
  %1084 = vmatpush1.bf16.msra.mxu0 0
  %1085 = vmatprep.subr.bf16.mxu0 0
  %1086 = vmatpush1.bf16.msra.mxu0 0
  %1087 = vmatprep.subr.bf16.mxu0 0
  %1088 = vmatpush1.bf16.msra.mxu0 0
  %1089 = vmatprep.subr.bf16.mxu0 0
  %1090 = vmatpush1.bf16.msra.mxu0 0
  %1091 = vmatprep.subr.bf16.mxu0 0
  %1092 = vmatpush1.bf16.msra.mxu0 0
  %1093 = vmatprep.subr.bf16.mxu0 0
  %1094 = vmatpush1.bf16.msra.mxu0 0
  %1095 = vmatprep.subr.bf16.mxu0 0
  %1096 = vmatpush1.bf16.msra.mxu0 0
  %1097 = vmatprep.subr.bf16.mxu0 0
  %1098 = vmatpush1.bf16.msra.mxu0 0
  %1099 = vmatprep.subr.bf16.mxu0 0
  %1100 = vmatpush1.bf16.msra.mxu0 0
  %1101 = vmatprep.subr.bf16.mxu0 0
  %1102 = vmatpush1.bf16.msra.mxu0 0
  %1103 = vmatprep.subr.bf16.mxu0 0
  %1104 = vmatpush1.bf16.msra.mxu0 0
  %1105 = vmatprep.mubr.bf16.mxu0 0
  %1106 = vmatmul.mubr.bf16.gmra.mrb[0].mxu0 %v1071
  %v1107 = vpop.f32.mrb[0].mxu0
  %v1108 = vadd.f32 %v923, %v1107
  %v1109 = vpop.f32.mrb[0].mxu0
  %v1110 = vadd.f32 %v927, %v1109
  %v1111 = vpop.f32.mrb[0].mxu0
  %v1112 = vpop.f32.mrb[0].mxu0
  %1113 = vdwg.mxu0
  %1114 = vmatprep.subr.bf16.mxu0 %v1033
  %1115 = vmatpush1.bf16.msra.mxu0 %v1032
  %1116 = vmatprep.subr.bf16.mxu0 %v1043
  %1117 = vmatpush1.bf16.msra.mxu0 %v1042
  %1118 = vmatprep.subr.bf16.mxu0 0
  %1119 = vmatpush1.bf16.msra.mxu0 0
  %1120 = vmatprep.subr.bf16.mxu0 0
  %1121 = vmatpush1.bf16.msra.mxu0 0
  %1122 = vmatprep.subr.bf16.mxu0 0
  %1123 = vmatpush1.bf16.msra.mxu0 0
  %1124 = vmatprep.subr.bf16.mxu0 0
  %1125 = vmatpush1.bf16.msra.mxu0 0
  %1126 = vmatprep.subr.bf16.mxu0 0
  %1127 = vmatpush1.bf16.msra.mxu0 0
  %1128 = vmatprep.subr.bf16.mxu0 0
  %1129 = vmatpush1.bf16.msra.mxu0 0
  %1130 = vmatprep.subr.bf16.mxu0 0
  %1131 = vmatpush1.bf16.msra.mxu0 0
  %1132 = vmatprep.subr.bf16.mxu0 0
  %1133 = vmatpush1.bf16.msra.mxu0 0
  %1134 = vmatprep.subr.bf16.mxu0 0
  %1135 = vmatpush1.bf16.msra.mxu0 0
  %1136 = vmatprep.subr.bf16.mxu0 0
  %1137 = vmatpush1.bf16.msra.mxu0 0
  %1138 = vmatprep.subr.bf16.mxu0 0
  %1139 = vmatpush1.bf16.msra.mxu0 0
  %1140 = vmatprep.subr.bf16.mxu0 0
  %1141 = vmatpush1.bf16.msra.mxu0 0
  %1142 = vmatprep.subr.bf16.mxu0 0
  %1143 = vmatpush1.bf16.msra.mxu0 0
  %1144 = vmatprep.subr.bf16.mxu0 0
  %1145 = vmatpush1.bf16.msra.mxu0 0
  %1146 = vmatprep.mubr.bf16.mxu0 0
  %1147 = vmatmul.mubr.bf16.gmra.mrb[0].mxu0 %v1071
  %v1148 = vpop.f32.mrb[0].mxu0
  %v1149 = vadd.f32 %v931, %v1148
  %v1150 = vpop.f32.mrb[0].mxu0
  %v1151 = vadd.f32 %v935, %v1150
  %v1152 = vpop.f32.mrb[0].mxu0
  %v1153 = vpop.f32.mrb[0].mxu0
  %1154 = vdwg.mxu0
  %1155 = vmatprep.subr.bf16.mxu0 %v1035
  %1156 = vmatpush1.bf16.msra.mxu0 %v1034
  %1157 = vmatprep.subr.bf16.mxu0 %v1045
  %1158 = vmatpush1.bf16.msra.mxu0 %v1044
  %1159 = vmatprep.subr.bf16.mxu0 0
  %1160 = vmatpush1.bf16.msra.mxu0 0
  %1161 = vmatprep.subr.bf16.mxu0 0
  %1162 = vmatpush1.bf16.msra.mxu0 0
  %1163 = vmatprep.subr.bf16.mxu0 0
  %1164 = vmatpush1.bf16.msra.mxu0 0
  %1165 = vmatprep.subr.bf16.mxu0 0
  %1166 = vmatpush1.bf16.msra.mxu0 0
  %1167 = vmatprep.subr.bf16.mxu0 0
  %1168 = vmatpush1.bf16.msra.mxu0 0
  %1169 = vmatprep.subr.bf16.mxu0 0
  %1170 = vmatpush1.bf16.msra.mxu0 0
  %1171 = vmatprep.subr.bf16.mxu0 0
  %1172 = vmatpush1.bf16.msra.mxu0 0
  %1173 = vmatprep.subr.bf16.mxu0 0
  %1174 = vmatpush1.bf16.msra.mxu0 0
  %1175 = vmatprep.subr.bf16.mxu0 0
  %1176 = vmatpush1.bf16.msra.mxu0 0
  %1177 = vmatprep.subr.bf16.mxu0 0
  %1178 = vmatpush1.bf16.msra.mxu0 0
  %1179 = vmatprep.subr.bf16.mxu0 0
  %1180 = vmatpush1.bf16.msra.mxu0 0
  %1181 = vmatprep.subr.bf16.mxu0 0
  %1182 = vmatpush1.bf16.msra.mxu0 0
  %1183 = vmatprep.subr.bf16.mxu0 0
  %1184 = vmatpush1.bf16.msra.mxu0 0
  %1185 = vmatprep.subr.bf16.mxu0 0
  %1186 = vmatpush1.bf16.msra.mxu0 0
  %1187 = vmatprep.mubr.bf16.mxu0 0
  %1188 = vmatmul.mubr.bf16.gmra.mrb[0].mxu0 %v1071
  %v1189 = vpop.f32.mrb[0].mxu0
  %v1190 = vadd.f32 %v939, %v1189
  %v1191 = vpop.f32.mrb[0].mxu0
  %v1192 = vadd.f32 %v943, %v1191
  %v1193 = vpop.f32.mrb[0].mxu0
  %v1194 = vpop.f32.mrb[0].mxu0
  %1195 = vdwg.mxu0
  %1196 = vmatprep.subr.bf16.mxu0 %v1037
  %1197 = vmatpush1.bf16.msra.mxu0 %v1036
  %1198 = vmatprep.subr.bf16.mxu0 %v1047
  %1199 = vmatpush1.bf16.msra.mxu0 %v1046
  %1200 = vmatprep.subr.bf16.mxu0 0
  %1201 = vmatpush1.bf16.msra.mxu0 0
  %1202 = vmatprep.subr.bf16.mxu0 0
  %1203 = vmatpush1.bf16.msra.mxu0 0
  %1204 = vmatprep.subr.bf16.mxu0 0
  %1205 = vmatpush1.bf16.msra.mxu0 0
  %1206 = vmatprep.subr.bf16.mxu0 0
  %1207 = vmatpush1.bf16.msra.mxu0 0
  %1208 = vmatprep.subr.bf16.mxu0 0
  %1209 = vmatpush1.bf16.msra.mxu0 0
  %1210 = vmatprep.subr.bf16.mxu0 0
  %1211 = vmatpush1.bf16.msra.mxu0 0
  %1212 = vmatprep.subr.bf16.mxu0 0
  %1213 = vmatpush1.bf16.msra.mxu0 0
  %1214 = vmatprep.subr.bf16.mxu0 0
  %1215 = vmatpush1.bf16.msra.mxu0 0
  %1216 = vmatprep.subr.bf16.mxu0 0
  %1217 = vmatpush1.bf16.msra.mxu0 0
  %1218 = vmatprep.subr.bf16.mxu0 0
  %1219 = vmatpush1.bf16.msra.mxu0 0
  %1220 = vmatprep.subr.bf16.mxu0 0
  %1221 = vmatpush1.bf16.msra.mxu0 0
  %1222 = vmatprep.subr.bf16.mxu0 0
  %1223 = vmatpush1.bf16.msra.mxu0 0
  %1224 = vmatprep.subr.bf16.mxu0 0
  %1225 = vmatpush1.bf16.msra.mxu0 0
  %1226 = vmatprep.subr.bf16.mxu0 0
  %1227 = vmatpush1.bf16.msra.mxu0 0
  %1228 = vmatprep.mubr.bf16.mxu0 0
  %1229 = vmatmul.mubr.bf16.gmra.mrb[0].mxu0 %v1071
  %v1230 = vpop.f32.mrb[0].mxu0
  %v1231 = vadd.f32 %v947, %v1230
  %v1232 = vpop.f32.mrb[0].mxu0
  %v1233 = vadd.f32 %v951, %v1232
  %v1234 = vpop.f32.mrb[0].mxu0
  %v1235 = vpop.f32.mrb[0].mxu0
  %1236 = vdwg.mxu0
  %1237 = vmatprep.subr.bf16.mxu0 %v1039
  %1238 = vmatpush1.bf16.msra.mxu0 %v1038
  %1239 = vmatprep.subr.bf16.mxu0 %v1049
  %1240 = vmatpush1.bf16.msra.mxu0 %v1048
  %1241 = vmatprep.subr.bf16.mxu0 0
  %1242 = vmatpush1.bf16.msra.mxu0 0
  %1243 = vmatprep.subr.bf16.mxu0 0
  %1244 = vmatpush1.bf16.msra.mxu0 0
  %1245 = vmatprep.subr.bf16.mxu0 0
  %1246 = vmatpush1.bf16.msra.mxu0 0
  %1247 = vmatprep.subr.bf16.mxu0 0
  %1248 = vmatpush1.bf16.msra.mxu0 0
  %1249 = vmatprep.subr.bf16.mxu0 0
  %1250 = vmatpush1.bf16.msra.mxu0 0
  %1251 = vmatprep.subr.bf16.mxu0 0
  %1252 = vmatpush1.bf16.msra.mxu0 0
  %1253 = vmatprep.subr.bf16.mxu0 0
  %1254 = vmatpush1.bf16.msra.mxu0 0
  %1255 = vmatprep.subr.bf16.mxu0 0
  %1256 = vmatpush1.bf16.msra.mxu0 0
  %1257 = vmatprep.subr.bf16.mxu0 0
  %1258 = vmatpush1.bf16.msra.mxu0 0
  %1259 = vmatprep.subr.bf16.mxu0 0
  %1260 = vmatpush1.bf16.msra.mxu0 0
  %1261 = vmatprep.subr.bf16.mxu0 0
  %1262 = vmatpush1.bf16.msra.mxu0 0
  %1263 = vmatprep.subr.bf16.mxu0 0
  %1264 = vmatpush1.bf16.msra.mxu0 0
  %1265 = vmatprep.subr.bf16.mxu0 0
  %1266 = vmatpush1.bf16.msra.mxu0 0
  %1267 = vmatprep.subr.bf16.mxu0 0
  %1268 = vmatpush1.bf16.msra.mxu0 0
  %1269 = vmatprep.mubr.bf16.mxu0 0
  %1270 = vmatmul.mubr.bf16.gmra.mrb[0].mxu0 %v1071
  %v1271 = vpop.f32.mrb[0].mxu0
  %v1272 = vadd.f32 %v955, %v1271
  %v1273 = vpop.f32.mrb[0].mxu0
  %v1274 = vadd.f32 %v959, %v1273
  %v1275 = vpop.f32.mrb[0].mxu0
  %v1276 = vpop.f32.mrb[0].mxu0
  %1277 = vdwg.mxu0
  %v1278 = vmax.f32 %v1108, 0.0
  %v1279 = vmax.f32 %v1110, 0.0
  %v1280 = vmax.f32 %v1149, 0.0
  %v1281 = vmax.f32 %v1151, 0.0
  %v1282 = vmax.f32 %v1190, 0.0
  %v1283 = vmax.f32 %v1192, 0.0
  %v1284 = vmax.f32 %v1231, 0.0
  %v1285 = vmax.f32 %v1233, 0.0
  %v1286 = vmax.f32 %v1272, 0.0
  %v1287 = vmax.f32 %v1274, 0.0
  %v1288 = vpack.c.bf16 %v1278, %v1278
  %v1289 = vpack.c.bf16 %v1279, %v1279
  %v1290 = vpack.c.bf16 %v1280, %v1280
  %v1291 = vpack.c.bf16 %v1281, %v1281
  %v1292 = vpack.c.bf16 %v1282, %v1282
  %v1293 = vpack.c.bf16 %v1283, %v1283
  %v1294 = vpack.c.bf16 %v1284, %v1284
  %v1295 = vpack.c.bf16 %v1285, %v1285
  %v1296 = vpack.c.bf16 %v1286, %v1286
  %v1297 = vpack.c.bf16 %v1287, %v1287
  %v1298 = vld [vmem:[%s5] sm:$0xf]
  %v1299 = vld [vmem:[%s5 + $0x4] sm:$0xf]
  %v1300 = vld [vmem:[%s5 + $0x8] sm:$0xf]
  %v1301 = vld [vmem:[%s5 + $0xc] sm:$0xf]
  %v1302 = vld [vmem:[%s5 + $0x10] sm:$0xf]
  %v1303 = vld [vmem:[%s5 + $0x14] sm:$0xf]
  %v1304 = vld [vmem:[%s5 + $0x18] sm:$0xf]
  %v1305 = vld [vmem:[%s5 + $0x1c] sm:$0xf]
  %v1306 = vld [vmem:[%s5 + $0x20] sm:$0xf]
  %v1307 = vld [vmem:[%s5 + $0x24] sm:$0xf]
  %v1308 = vld [vmem:[%s5 + $0x28] sm:$0xf]
  %v1309 = vld [vmem:[%s5 + $0x2c] sm:$0xf]
  %v1310 = vld [vmem:[%s5 + $0x30] sm:$0xf]
  %v1311 = vld [vmem:[%s5 + $0x34] sm:$0xf]
  %v1312 = vld [vmem:[%s5 + $0x38] sm:$0xf]
  %v1313 = vld [vmem:[%s5 + $0x3c] sm:$0xf]
  %v1314 = vld [vmem:[%s5 + $0x40] sm:$0xf]
  %v1315 = vld [vmem:[%s5 + $0x44] sm:$0xf]
  %v1316 = vld [vmem:[%s5 + $0x48] sm:$0xf]
  %v1317 = vld [vmem:[%s5 + $0x4c] sm:$0xf]
  %v1318 = vld [vmem:[%s5 + $0x50] sm:$0xf]
  %v1319 = vld [vmem:[%s5 + $0x54] sm:$0xf]
  %v1320 = vld [vmem:[%s5 + $0x58] sm:$0xf]
  %v1321 = vld [vmem:[%s5 + $0x5c] sm:$0xf]
  %v1322 = vld [vmem:[%s5 + $0x60] sm:$0xf]
  %v1323 = vld [vmem:[%s5 + $0x64] sm:$0xf]
  %v1324 = vld [vmem:[%s5 + $0x68] sm:$0xf]
  %v1325 = vld [vmem:[%s5 + $0x6c] sm:$0xf]
  %v1326 = vld [vmem:[%s5 + $0x70] sm:$0xf]
  %v1327 = vld [vmem:[%s5 + $0x74] sm:$0xf]
  %v1328 = vld [vmem:[%s5 + $0x78] sm:$0xf]
  %v1329 = vld [vmem:[%s5 + $0x7c] sm:$0xf]
  %v1330 = vld [vmem:[%s5 + $0x80] sm:$0xf]
  %v1331 = vld [vmem:[%s5 + $0x84] sm:$0xf]
  %v1332 = vld [vmem:[%s5 + $0x88] sm:$0xf]
  %v1333 = vld [vmem:[%s5 + $0x8c] sm:$0xf]
  %v1334 = vld [vmem:[%s5 + $0x90] sm:$0xf]
  %v1335 = vld [vmem:[%s5 + $0x94] sm:$0xf]
  %v1336 = vld [vmem:[%s5 + $0x98] sm:$0xf]
  %v1337 = vld [vmem:[%s5 + $0x9c] sm:$0xf]
  %v1338 = vld [vmem:[%s5 + $0xa0] sm:$0xf]
  %v1339 = vld [vmem:[%s5 + $0xa4] sm:$0xf]
  %v1340 = vld [vmem:[%s5 + $0xa8] sm:$0xf]
  %v1341 = vld [vmem:[%s5 + $0xac] sm:$0xf]
  %v1342 = vld [vmem:[%s5 + $0xb0] sm:$0xf]
  %v1343 = vld [vmem:[%s5 + $0xb4] sm:$0xf]
  %v1344 = vld [vmem:[%s5 + $0xb8] sm:$0xf]
  %v1345 = vld [vmem:[%s5 + $0xbc] sm:$0xf]
  %v1346 = vld [vmem:[%s5 + $0xc0] sm:$0xf]
  %v1347 = vld [vmem:[%s5 + $0xc4] sm:$0xf]
  %v1348 = vld [vmem:[%s5 + $0xc8] sm:$0xf]
  %v1349 = vld [vmem:[%s5 + $0xcc] sm:$0xf]
  %v1350 = vld [vmem:[%s5 + $0xd0] sm:$0xf]
  %v1351 = vld [vmem:[%s5 + $0xd4] sm:$0xf]
  %v1352 = vld [vmem:[%s5 + $0xd8] sm:$0xf]
  %v1353 = vld [vmem:[%s5 + $0xdc] sm:$0xf]
  %v1354 = vld [vmem:[%s5 + $0xe0] sm:$0xf]
  %v1355 = vld [vmem:[%s5 + $0xe4] sm:$0xf]
  %v1356 = vld [vmem:[%s5 + $0xe8] sm:$0xf]
  %v1357 = vld [vmem:[%s5 + $0xec] sm:$0xf]
  %v1358 = vld [vmem:[%s5 + $0xf0] sm:$0xf]
  %v1359 = vld [vmem:[%s5 + $0xf4] sm:$0xf]
  %v1360 = vld [vmem:[%s5 + $0xf8] sm:$0xf]
  %v1361 = vld [vmem:[%s5 + $0xfc] sm:$0xf]
  %v1362 = vld [vmem:[%s5 + $0x100] sm:$0xf]
  %v1363 = vld [vmem:[%s5 + $0x104] sm:$0xf]
  %v1364 = vld [vmem:[%s5 + $0x108] sm:$0xf]
  %v1365 = vld [vmem:[%s5 + $0x10c] sm:$0xf]
  %v1366 = vld [vmem:[%s5 + $0x110] sm:$0xf]
  %v1367 = vld [vmem:[%s5 + $0x114] sm:$0xf]
  %v1368 = vld [vmem:[%s5 + $0x118] sm:$0xf]
  %v1369 = vld [vmem:[%s5 + $0x11c] sm:$0xf]
  %v1370 = vld [vmem:[%s5 + $0x120] sm:$0xf]
  %v1371 = vld [vmem:[%s5 + $0x124] sm:$0xf]
  %v1372 = vld [vmem:[%s5 + $0x128] sm:$0xf]
  %v1373 = vld [vmem:[%s5 + $0x12c] sm:$0xf]
  %v1374 = vld [vmem:[%s5 + $0x130] sm:$0xf]
  %v1375 = vld [vmem:[%s5 + $0x134] sm:$0xf]
  %v1376 = vld [vmem:[%s5 + $0x138] sm:$0xf]
  %v1377 = vld [vmem:[%s5 + $0x13c] sm:$0xf]
  %v1378 = vld [vmem:[%s5 + $0x140] sm:$0xf]
  %v1379 = vld [vmem:[%s5 + $0x144] sm:$0xf]
  %v1380 = vld [vmem:[%s5 + $0x148] sm:$0xf]
  %v1381 = vld [vmem:[%s5 + $0x14c] sm:$0xf]
  %v1382 = vld [vmem:[%s5 + $0x150] sm:$0xf]
  %v1383 = vld [vmem:[%s5 + $0x154] sm:$0xf]
  %v1384 = vld [vmem:[%s5 + $0x158] sm:$0xf]
  %v1385 = vld [vmem:[%s5 + $0x15c] sm:$0xf]
  %v1386 = vld [vmem:[%s5 + $0x160] sm:$0xf]
  %v1387 = vld [vmem:[%s5 + $0x164] sm:$0xf]
  %v1388 = vld [vmem:[%s5 + $0x168] sm:$0xf]
  %v1389 = vld [vmem:[%s5 + $0x16c] sm:$0xf]
  %v1390 = vld [vmem:[%s5 + $0x170] sm:$0xf]
  %v1391 = vld [vmem:[%s5 + $0x174] sm:$0xf]
  %v1392 = vld [vmem:[%s5 + $0x178] sm:$0xf]
  %v1393 = vld [vmem:[%s5 + $0x17c] sm:$0xf]
  %v1394 = vld [vmem:[%s5 + $0x180] sm:$0xf]
  %v1395 = vld [vmem:[%s5 + $0x184] sm:$0xf]
  %v1396 = vld [vmem:[%s5 + $0x188] sm:$0xf]
  %v1397 = vld [vmem:[%s5 + $0x18c] sm:$0xf]
  %v1398 = vld [vmem:[%s5 + $0x190] sm:$0xf]
  %v1399 = vld [vmem:[%s5 + $0x194] sm:$0xf]
  %v1400 = vld [vmem:[%s5 + $0x198] sm:$0xf]
  %v1401 = vld [vmem:[%s5 + $0x19c] sm:$0xf]
  %v1402 = vld [vmem:[%s5 + $0x1a0] sm:$0xf]
  %v1403 = vld [vmem:[%s5 + $0x1a4] sm:$0xf]
  %v1404 = vld [vmem:[%s5 + $0x1a8] sm:$0xf]
  %v1405 = vld [vmem:[%s5 + $0x1ac] sm:$0xf]
  %v1406 = vld [vmem:[%s5 + $0x1b0] sm:$0xf]
  %v1407 = vld [vmem:[%s5 + $0x1b4] sm:$0xf]
  %v1408 = vld [vmem:[%s5 + $0x1b8] sm:$0xf]
  %v1409 = vld [vmem:[%s5 + $0x1bc] sm:$0xf]
  %v1410 = vld [vmem:[%s5 + $0x1c0] sm:$0xf]
  %v1411 = vld [vmem:[%s5 + $0x1c4] sm:$0xf]
  %v1412 = vld [vmem:[%s5 + $0x1c8] sm:$0xf]
  %v1413 = vld [vmem:[%s5 + $0x1cc] sm:$0xf]
  %v1414 = vld [vmem:[%s5 + $0x1d0] sm:$0xf]
  %v1415 = vld [vmem:[%s5 + $0x1d4] sm:$0xf]
  %v1416 = vld [vmem:[%s5 + $0x1d8] sm:$0xf]
  %v1417 = vld [vmem:[%s5 + $0x1dc] sm:$0xf]
  %v1418 = vld [vmem:[%s5 + $0x1e0] sm:$0xf]
  %v1419 = vld [vmem:[%s5 + $0x1e4] sm:$0xf]
  %v1420 = vld [vmem:[%s5 + $0x1e8] sm:$0xf]
  %v1421 = vld [vmem:[%s5 + $0x1ec] sm:$0xf]
  %v1422 = vld [vmem:[%s5 + $0x1f0] sm:$0xf]
  %v1423 = vld [vmem:[%s5 + $0x1f4] sm:$0xf]
  %v1424 = vld [vmem:[%s5 + $0x1f8] sm:$0xf]
  %v1425 = vld [vmem:[%s5 + $0x1fc] sm:$0xf]
  %v1426 = vld [vmem:[%s5 + $0x200] sm:$0xf]
  %v1427 = vld [vmem:[%s5 + $0x204] sm:$0xf]
  %v1428 = vld [vmem:[%s5 + $0x208] sm:$0xf]
  %v1429 = vld [vmem:[%s5 + $0x20c] sm:$0xf]
  %v1430 = vld [vmem:[%s5 + $0x210] sm:$0xf]
  %v1431 = vld [vmem:[%s5 + $0x214] sm:$0xf]
  %v1432 = vld [vmem:[%s5 + $0x218] sm:$0xf]
  %v1433 = vld [vmem:[%s5 + $0x21c] sm:$0xf]
  %v1434 = vld [vmem:[%s5 + $0x220] sm:$0xf]
  %v1435 = vld [vmem:[%s5 + $0x224] sm:$0xf]
  %v1436 = vld [vmem:[%s5 + $0x228] sm:$0xf]
  %v1437 = vld [vmem:[%s5 + $0x22c] sm:$0xf]
  %v1438 = vld [vmem:[%s5 + $0x230] sm:$0xf]
  %v1439 = vld [vmem:[%s5 + $0x234] sm:$0xf]
  %v1440 = vld [vmem:[%s5 + $0x238] sm:$0xf]
  %v1441 = vld [vmem:[%s5 + $0x23c] sm:$0xf]
  %v1442 = vld [vmem:[%s5 + $0x240] sm:$0xf]
  %v1443 = vld [vmem:[%s5 + $0x244] sm:$0xf]
  %v1444 = vld [vmem:[%s5 + $0x248] sm:$0xf]
  %v1445 = vld [vmem:[%s5 + $0x24c] sm:$0xf]
  %v1446 = vld [vmem:[%s5 + $0x250] sm:$0xf]
  %v1447 = vld [vmem:[%s5 + $0x254] sm:$0xf]
  %v1448 = vld [vmem:[%s5 + $0x258] sm:$0xf]
  %v1449 = vld [vmem:[%s5 + $0x25c] sm:$0xf]
  %v1450 = vld [vmem:[%s5 + $0x260] sm:$0xf]
  %v1451 = vld [vmem:[%s5 + $0x264] sm:$0xf]
  %v1452 = vld [vmem:[%s5 + $0x268] sm:$0xf]
  %v1453 = vld [vmem:[%s5 + $0x26c] sm:$0xf]
  %v1454 = vld [vmem:[%s5 + $0x270] sm:$0xf]
  %v1455 = vld [vmem:[%s5 + $0x274] sm:$0xf]
  %v1456 = vld [vmem:[%s5 + $0x278] sm:$0xf]
  %v1457 = vld [vmem:[%s5 + $0x27c] sm:$0xf]
  %v1458 = vld [vmem:[%s6] sm:$0x1]
  %v1460 = vlaneseq
  %v1461 = vshrl.u32 %v1460, 7
  %v1462 = vsub.s32 0, %v1461
  %v1463 = vrot.slane %v1458, %v1462
  %v1625 = vunpack.c.l.b16 %v1298
  %v1626 = vunpack.c.l.b16 %v1299
  %v1627 = vunpack.c.l.b16 %v1300
  %v1628 = vunpack.c.l.b16 %v1301
  %v1629 = vunpack.c.l.b16 %v1302
  %v1630 = vunpack.c.l.b16 %v1303
  %v1631 = vunpack.c.l.b16 %v1304
  %v1632 = vunpack.c.l.b16 %v1305
  %v1633 = vunpack.c.l.b16 %v1306
  %v1634 = vunpack.c.l.b16 %v1307
  %v1635 = vunpack.c.l.b16 %v1308
  %v1636 = vunpack.c.l.b16 %v1309
  %v1637 = vunpack.c.l.b16 %v1310
  %v1638 = vunpack.c.l.b16 %v1311
  %v1639 = vunpack.c.l.b16 %v1312
  %v1640 = vunpack.c.l.b16 %v1313
  %v1641 = vunpack.c.l.b16 %v1314
  %v1642 = vunpack.c.l.b16 %v1315
  %v1643 = vunpack.c.l.b16 %v1316
  %v1644 = vunpack.c.l.b16 %v1317
  %v1645 = vunpack.c.l.b16 %v1318
  %v1646 = vunpack.c.l.b16 %v1319
  %v1647 = vunpack.c.l.b16 %v1320
  %v1648 = vunpack.c.l.b16 %v1321
  %v1649 = vunpack.c.l.b16 %v1322
  %v1650 = vunpack.c.l.b16 %v1323
  %v1651 = vunpack.c.l.b16 %v1324
  %v1652 = vunpack.c.l.b16 %v1325
  %v1653 = vunpack.c.l.b16 %v1326
  %v1654 = vunpack.c.l.b16 %v1327
  %v1655 = vunpack.c.l.b16 %v1328
  %v1656 = vunpack.c.l.b16 %v1329
  %v1657 = vunpack.c.l.b16 %v1330
  %v1658 = vunpack.c.l.b16 %v1331
  %v1659 = vunpack.c.l.b16 %v1332
  %v1660 = vunpack.c.l.b16 %v1333
  %v1661 = vunpack.c.l.b16 %v1334
  %v1662 = vunpack.c.l.b16 %v1335
  %v1663 = vunpack.c.l.b16 %v1336
  %v1664 = vunpack.c.l.b16 %v1337
  %v1665 = vunpack.c.l.b16 %v1338
  %v1666 = vunpack.c.l.b16 %v1339
  %v1667 = vunpack.c.l.b16 %v1340
  %v1668 = vunpack.c.l.b16 %v1341
  %v1669 = vunpack.c.l.b16 %v1342
  %v1670 = vunpack.c.l.b16 %v1343
  %v1671 = vunpack.c.l.b16 %v1344
  %v1672 = vunpack.c.l.b16 %v1345
  %v1673 = vunpack.c.l.b16 %v1346
  %v1674 = vunpack.c.l.b16 %v1347
  %v1675 = vunpack.c.l.b16 %v1348
  %v1676 = vunpack.c.l.b16 %v1349
  %v1677 = vunpack.c.l.b16 %v1350
  %v1678 = vunpack.c.l.b16 %v1351
  %v1679 = vunpack.c.l.b16 %v1352
  %v1680 = vunpack.c.l.b16 %v1353
  %v1681 = vunpack.c.l.b16 %v1354
  %v1682 = vunpack.c.l.b16 %v1355
  %v1683 = vunpack.c.l.b16 %v1356
  %v1684 = vunpack.c.l.b16 %v1357
  %v1685 = vunpack.c.l.b16 %v1358
  %v1686 = vunpack.c.l.b16 %v1359
  %v1687 = vunpack.c.l.b16 %v1360
  %v1688 = vunpack.c.l.b16 %v1361
  %v1689 = vunpack.c.l.b16 %v1362
  %v1690 = vunpack.c.l.b16 %v1363
  %v1691 = vunpack.c.l.b16 %v1364
  %v1692 = vunpack.c.l.b16 %v1365
  %v1693 = vunpack.c.l.b16 %v1366
  %v1694 = vunpack.c.l.b16 %v1367
  %v1695 = vunpack.c.l.b16 %v1368
  %v1696 = vunpack.c.l.b16 %v1369
  %v1697 = vunpack.c.l.b16 %v1370
  %v1698 = vunpack.c.l.b16 %v1371
  %v1699 = vunpack.c.l.b16 %v1372
  %v1700 = vunpack.c.l.b16 %v1373
  %v1701 = vunpack.c.l.b16 %v1374
  %v1702 = vunpack.c.l.b16 %v1375
  %v1703 = vunpack.c.l.b16 %v1376
  %v1704 = vunpack.c.l.b16 %v1377
  %v1705 = vunpack.c.l.b16 %v1378
  %v1706 = vunpack.c.l.b16 %v1379
  %v1707 = vunpack.c.l.b16 %v1380
  %v1708 = vunpack.c.l.b16 %v1381
  %v1709 = vunpack.c.l.b16 %v1382
  %v1710 = vunpack.c.l.b16 %v1383
  %v1711 = vunpack.c.l.b16 %v1384
  %v1712 = vunpack.c.l.b16 %v1385
  %v1713 = vunpack.c.l.b16 %v1386
  %v1714 = vunpack.c.l.b16 %v1387
  %v1715 = vunpack.c.l.b16 %v1388
  %v1716 = vunpack.c.l.b16 %v1389
  %v1717 = vunpack.c.l.b16 %v1390
  %v1718 = vunpack.c.l.b16 %v1391
  %v1719 = vunpack.c.l.b16 %v1392
  %v1720 = vunpack.c.l.b16 %v1393
  %v1721 = vunpack.c.l.b16 %v1394
  %v1722 = vunpack.c.l.b16 %v1395
  %v1723 = vunpack.c.l.b16 %v1396
  %v1724 = vunpack.c.l.b16 %v1397
  %v1725 = vunpack.c.l.b16 %v1398
  %v1726 = vunpack.c.l.b16 %v1399
  %v1727 = vunpack.c.l.b16 %v1400
  %v1728 = vunpack.c.l.b16 %v1401
  %v1729 = vunpack.c.l.b16 %v1402
  %v1730 = vunpack.c.l.b16 %v1403
  %v1731 = vunpack.c.l.b16 %v1404
  %v1732 = vunpack.c.l.b16 %v1405
  %v1733 = vunpack.c.l.b16 %v1406
  %v1734 = vunpack.c.l.b16 %v1407
  %v1735 = vunpack.c.l.b16 %v1408
  %v1736 = vunpack.c.l.b16 %v1409
  %v1737 = vunpack.c.l.b16 %v1410
  %v1738 = vunpack.c.l.b16 %v1411
  %v1739 = vunpack.c.l.b16 %v1412
  %v1740 = vunpack.c.l.b16 %v1413
  %v1741 = vunpack.c.l.b16 %v1414
  %v1742 = vunpack.c.l.b16 %v1415
  %v1743 = vunpack.c.l.b16 %v1416
  %v1744 = vunpack.c.l.b16 %v1417
  %v1745 = vunpack.c.l.b16 %v1418
  %v1746 = vunpack.c.l.b16 %v1419
  %v1747 = vunpack.c.l.b16 %v1420
  %v1748 = vunpack.c.l.b16 %v1421
  %v1749 = vunpack.c.l.b16 %v1422
  %v1750 = vunpack.c.l.b16 %v1423
  %v1751 = vunpack.c.l.b16 %v1424
  %v1752 = vunpack.c.l.b16 %v1425
  %v1753 = vunpack.c.l.b16 %v1426
  %v1754 = vunpack.c.l.b16 %v1427
  %v1755 = vunpack.c.l.b16 %v1428
  %v1756 = vunpack.c.l.b16 %v1429
  %v1757 = vunpack.c.l.b16 %v1430
  %v1758 = vunpack.c.l.b16 %v1431
  %v1759 = vunpack.c.l.b16 %v1432
  %v1760 = vunpack.c.l.b16 %v1433
  %v1761 = vunpack.c.l.b16 %v1434
  %v1762 = vunpack.c.l.b16 %v1435
  %v1763 = vunpack.c.l.b16 %v1436
  %v1764 = vunpack.c.l.b16 %v1437
  %v1765 = vunpack.c.l.b16 %v1438
  %v1766 = vunpack.c.l.b16 %v1439
  %v1767 = vunpack.c.l.b16 %v1440
  %v1768 = vunpack.c.l.b16 %v1441
  %v1769 = vunpack.c.l.b16 %v1442
  %v1770 = vunpack.c.l.b16 %v1443
  %v1771 = vunpack.c.l.b16 %v1444
  %v1772 = vunpack.c.l.b16 %v1445
  %v1773 = vunpack.c.l.b16 %v1446
  %v1774 = vunpack.c.l.b16 %v1447
  %v1775 = vunpack.c.l.b16 %v1448
  %v1776 = vunpack.c.l.b16 %v1449
  %v1777 = vunpack.c.l.b16 %v1450
  %v1778 = vunpack.c.l.b16 %v1451
  %v1779 = vunpack.c.l.b16 %v1452
  %v1780 = vunpack.c.l.b16 %v1453
  %v1781 = vunpack.c.l.b16 %v1454
  %v1782 = vunpack.c.l.b16 %v1455
  %v1783 = vunpack.c.l.b16 %v1456
  %v1784 = vunpack.c.l.b16 %v1457
  %v1785 = vpack.c.b16 %v1626, %v1625
  %v1786 = vpack.c.b16 %v1628, %v1627
  %v1787 = vpack.c.b16 %v1630, %v1629
  %v1788 = vpack.c.b16 %v1632, %v1631
  %v1789 = vpack.c.b16 %v1634, %v1633
  %v1790 = vpack.c.b16 %v1636, %v1635
  %v1791 = vpack.c.b16 %v1638, %v1637
  %v1792 = vpack.c.b16 %v1640, %v1639
  %v1793 = vpack.c.b16 %v1642, %v1641
  %v1794 = vpack.c.b16 %v1644, %v1643
  %v1795 = vpack.c.b16 %v1646, %v1645
  %v1796 = vpack.c.b16 %v1648, %v1647
  %v1797 = vpack.c.b16 %v1650, %v1649
  %v1798 = vpack.c.b16 %v1652, %v1651
  %v1799 = vpack.c.b16 %v1654, %v1653
  %v1800 = vpack.c.b16 %v1656, %v1655
  %v1801 = vpack.c.b16 %v1658, %v1657
  %v1802 = vpack.c.b16 %v1660, %v1659
  %v1803 = vpack.c.b16 %v1662, %v1661
  %v1804 = vpack.c.b16 %v1664, %v1663
  %v1805 = vpack.c.b16 %v1666, %v1665
  %v1806 = vpack.c.b16 %v1668, %v1667
  %v1807 = vpack.c.b16 %v1670, %v1669
  %v1808 = vpack.c.b16 %v1672, %v1671
  %v1809 = vpack.c.b16 %v1674, %v1673
  %v1810 = vpack.c.b16 %v1676, %v1675
  %v1811 = vpack.c.b16 %v1678, %v1677
  %v1812 = vpack.c.b16 %v1680, %v1679
  %v1813 = vpack.c.b16 %v1682, %v1681
  %v1814 = vpack.c.b16 %v1684, %v1683
  %v1815 = vpack.c.b16 %v1686, %v1685
  %v1816 = vpack.c.b16 %v1688, %v1687
  %v1817 = vpack.c.b16 %v1690, %v1689
  %v1818 = vpack.c.b16 %v1692, %v1691
  %v1819 = vpack.c.b16 %v1694, %v1693
  %v1820 = vpack.c.b16 %v1696, %v1695
  %v1821 = vpack.c.b16 %v1698, %v1697
  %v1822 = vpack.c.b16 %v1700, %v1699
  %v1823 = vpack.c.b16 %v1702, %v1701
  %v1824 = vpack.c.b16 %v1704, %v1703
  %v1825 = vpack.c.b16 %v1706, %v1705
  %v1826 = vpack.c.b16 %v1708, %v1707
  %v1827 = vpack.c.b16 %v1710, %v1709
  %v1828 = vpack.c.b16 %v1712, %v1711
  %v1829 = vpack.c.b16 %v1714, %v1713
  %v1830 = vpack.c.b16 %v1716, %v1715
  %v1831 = vpack.c.b16 %v1718, %v1717
  %v1832 = vpack.c.b16 %v1720, %v1719
  %v1833 = vpack.c.b16 %v1722, %v1721
  %v1834 = vpack.c.b16 %v1724, %v1723
  %v1835 = vpack.c.b16 %v1726, %v1725
  %v1836 = vpack.c.b16 %v1728, %v1727
  %v1837 = vpack.c.b16 %v1730, %v1729
  %v1838 = vpack.c.b16 %v1732, %v1731
  %v1839 = vpack.c.b16 %v1734, %v1733
  %v1840 = vpack.c.b16 %v1736, %v1735
  %v1841 = vpack.c.b16 %v1738, %v1737
  %v1842 = vpack.c.b16 %v1740, %v1739
  %v1843 = vpack.c.b16 %v1742, %v1741
  %v1844 = vpack.c.b16 %v1744, %v1743
  %v1845 = vpack.c.b16 %v1746, %v1745
  %v1846 = vpack.c.b16 %v1748, %v1747
  %v1847 = vpack.c.b16 %v1750, %v1749
  %v1848 = vpack.c.b16 %v1752, %v1751
  %v1849 = vpack.c.b16 %v1754, %v1753
  %v1850 = vpack.c.b16 %v1756, %v1755
  %v1851 = vpack.c.b16 %v1758, %v1757
  %v1852 = vpack.c.b16 %v1760, %v1759
  %v1853 = vpack.c.b16 %v1762, %v1761
  %v1854 = vpack.c.b16 %v1764, %v1763
  %v1855 = vpack.c.b16 %v1766, %v1765
  %v1856 = vpack.c.b16 %v1768, %v1767
  %v1857 = vpack.c.b16 %v1770, %v1769
  %v1858 = vpack.c.b16 %v1772, %v1771
  %v1859 = vpack.c.b16 %v1774, %v1773
  %v1860 = vpack.c.b16 %v1776, %v1775
  %v1861 = vpack.c.b16 %v1778, %v1777
  %v1862 = vpack.c.b16 %v1780, %v1779
  %v1863 = vpack.c.b16 %v1782, %v1781
  %v1864 = vpack.c.b16 %v1784, %v1783
  %1945 = vmatprep.subr.bf16.mxu0 0
  %1946 = vmatpush1.bf16.msra.mxu0 %v1785
  %1947 = vmatprep.subr.bf16.mxu0 0
  %1948 = vmatpush1.bf16.msra.mxu0 %v1786
  %1949 = vmatprep.subr.bf16.mxu0 0
  %1950 = vmatpush1.bf16.msra.mxu0 %v1787
  %1951 = vmatprep.subr.bf16.mxu0 0
  %1952 = vmatpush1.bf16.msra.mxu0 %v1788
  %1953 = vmatprep.subr.bf16.mxu0 0
  %1954 = vmatpush1.bf16.msra.mxu0 %v1789
  %1955 = vmatprep.subr.bf16.mxu0 0
  %1956 = vmatpush1.bf16.msra.mxu0 %v1790
  %1957 = vmatprep.subr.bf16.mxu0 0
  %1958 = vmatpush1.bf16.msra.mxu0 %v1791
  %1959 = vmatprep.subr.bf16.mxu0 0
  %1960 = vmatpush1.bf16.msra.mxu0 %v1792
  %1961 = vmatprep.subr.bf16.mxu0 0
  %1962 = vmatpush1.bf16.msra.mxu0 %v1793
  %1963 = vmatprep.subr.bf16.mxu0 0
  %1964 = vmatpush1.bf16.msra.mxu0 %v1794
  %1965 = vmatprep.subr.bf16.mxu0 0
  %1966 = vmatpush1.bf16.msra.mxu0 %v1795
  %1967 = vmatprep.subr.bf16.mxu0 0
  %1968 = vmatpush1.bf16.msra.mxu0 %v1796
  %1969 = vmatprep.subr.bf16.mxu0 0
  %1970 = vmatpush1.bf16.msra.mxu0 %v1797
  %1971 = vmatprep.subr.bf16.mxu0 0
  %1972 = vmatpush1.bf16.msra.mxu0 %v1798
  %1973 = vmatprep.subr.bf16.mxu0 0
  %1974 = vmatpush1.bf16.msra.mxu0 %v1799
  %1975 = vmatprep.subr.bf16.mxu0 0
  %1976 = vmatpush1.bf16.msra.mxu0 %v1800
  %1977 = vmatprep.mubr.bf16.mxu0 %v1289
  %1978 = vmatmul.mubr.bf16.gmra.mrb[0].mxu0 %v1288
  %v1979 = vpop.f32.mrb[0].mxu0
  %v1980 = vadd.f32 %v1463, %v1979
  %v1981 = vpop.f32.mrb[0].mxu0
  %v1982 = vpop.f32.mrb[0].mxu0
  %v1983 = vpop.f32.mrb[0].mxu0
  %1984 = vdwg.mxu0
  %1985 = vmatprep.subr.bf16.mxu0 0
  %1986 = vmatpush1.bf16.msra.mxu0 %v1801
  %1987 = vmatprep.subr.bf16.mxu0 0
  %1988 = vmatpush1.bf16.msra.mxu0 %v1802
  %1989 = vmatprep.subr.bf16.mxu0 0
  %1990 = vmatpush1.bf16.msra.mxu0 %v1803
  %1991 = vmatprep.subr.bf16.mxu0 0
  %1992 = vmatpush1.bf16.msra.mxu0 %v1804
  %1993 = vmatprep.subr.bf16.mxu0 0
  %1994 = vmatpush1.bf16.msra.mxu0 %v1805
  %1995 = vmatprep.subr.bf16.mxu0 0
  %1996 = vmatpush1.bf16.msra.mxu0 %v1806
  %1997 = vmatprep.subr.bf16.mxu0 0
  %1998 = vmatpush1.bf16.msra.mxu0 %v1807
  %1999 = vmatprep.subr.bf16.mxu0 0
  %2000 = vmatpush1.bf16.msra.mxu0 %v1808
  %2001 = vmatprep.subr.bf16.mxu0 0
  %2002 = vmatpush1.bf16.msra.mxu0 %v1809
  %2003 = vmatprep.subr.bf16.mxu0 0
  %2004 = vmatpush1.bf16.msra.mxu0 %v1810
  %2005 = vmatprep.subr.bf16.mxu0 0
  %2006 = vmatpush1.bf16.msra.mxu0 %v1811
  %2007 = vmatprep.subr.bf16.mxu0 0
  %2008 = vmatpush1.bf16.msra.mxu0 %v1812
  %2009 = vmatprep.subr.bf16.mxu0 0
  %2010 = vmatpush1.bf16.msra.mxu0 %v1813
  %2011 = vmatprep.subr.bf16.mxu0 0
  %2012 = vmatpush1.bf16.msra.mxu0 %v1814
  %2013 = vmatprep.subr.bf16.mxu0 0
  %2014 = vmatpush1.bf16.msra.mxu0 %v1815
  %2015 = vmatprep.subr.bf16.mxu0 0
  %2016 = vmatpush1.bf16.msra.mxu0 %v1816
  %2017 = vmatprep.mubr.bf16.mxu0 %v1291
  %2018 = vmatmul.mubr.bf16.gmra.mrb[0].mxu0 %v1290
  %v2019 = vpop.f32.mrb[0].mxu0
  %v2020 = vadd.f32 %v1980, %v2019
  %v2021 = vpop.f32.mrb[0].mxu0
  %v2022 = vpop.f32.mrb[0].mxu0
  %v2023 = vpop.f32.mrb[0].mxu0
  %2024 = vdwg.mxu0
  %2025 = vmatprep.subr.bf16.mxu0 0
  %2026 = vmatpush1.bf16.msra.mxu0 %v1817
  %2027 = vmatprep.subr.bf16.mxu0 0
  %2028 = vmatpush1.bf16.msra.mxu0 %v1818
  %2029 = vmatprep.subr.bf16.mxu0 0
  %2030 = vmatpush1.bf16.msra.mxu0 %v1819
  %2031 = vmatprep.subr.bf16.mxu0 0
  %2032 = vmatpush1.bf16.msra.mxu0 %v1820
  %2033 = vmatprep.subr.bf16.mxu0 0
  %2034 = vmatpush1.bf16.msra.mxu0 %v1821
  %2035 = vmatprep.subr.bf16.mxu0 0
  %2036 = vmatpush1.bf16.msra.mxu0 %v1822
  %2037 = vmatprep.subr.bf16.mxu0 0
  %2038 = vmatpush1.bf16.msra.mxu0 %v1823
  %2039 = vmatprep.subr.bf16.mxu0 0
  %2040 = vmatpush1.bf16.msra.mxu0 %v1824
  %2041 = vmatprep.subr.bf16.mxu0 0
  %2042 = vmatpush1.bf16.msra.mxu0 %v1825
  %2043 = vmatprep.subr.bf16.mxu0 0
  %2044 = vmatpush1.bf16.msra.mxu0 %v1826
  %2045 = vmatprep.subr.bf16.mxu0 0
  %2046 = vmatpush1.bf16.msra.mxu0 %v1827
  %2047 = vmatprep.subr.bf16.mxu0 0
  %2048 = vmatpush1.bf16.msra.mxu0 %v1828
  %2049 = vmatprep.subr.bf16.mxu0 0
  %2050 = vmatpush1.bf16.msra.mxu0 %v1829
  %2051 = vmatprep.subr.bf16.mxu0 0
  %2052 = vmatpush1.bf16.msra.mxu0 %v1830
  %2053 = vmatprep.subr.bf16.mxu0 0
  %2054 = vmatpush1.bf16.msra.mxu0 %v1831
  %2055 = vmatprep.subr.bf16.mxu0 0
  %2056 = vmatpush1.bf16.msra.mxu0 %v1832
  %2057 = vmatprep.mubr.bf16.mxu0 %v1293
  %2058 = vmatmul.mubr.bf16.gmra.mrb[0].mxu0 %v1292
  %v2059 = vpop.f32.mrb[0].mxu0
  %v2060 = vadd.f32 %v2020, %v2059
  %v2061 = vpop.f32.mrb[0].mxu0
  %v2062 = vpop.f32.mrb[0].mxu0
  %v2063 = vpop.f32.mrb[0].mxu0
  %2064 = vdwg.mxu0
  %2065 = vmatprep.subr.bf16.mxu0 0
  %2066 = vmatpush1.bf16.msra.mxu0 %v1833
  %2067 = vmatprep.subr.bf16.mxu0 0
  %2068 = vmatpush1.bf16.msra.mxu0 %v1834
  %2069 = vmatprep.subr.bf16.mxu0 0
  %2070 = vmatpush1.bf16.msra.mxu0 %v1835
  %2071 = vmatprep.subr.bf16.mxu0 0
  %2072 = vmatpush1.bf16.msra.mxu0 %v1836
  %2073 = vmatprep.subr.bf16.mxu0 0
  %2074 = vmatpush1.bf16.msra.mxu0 %v1837
  %2075 = vmatprep.subr.bf16.mxu0 0
  %2076 = vmatpush1.bf16.msra.mxu0 %v1838
  %2077 = vmatprep.subr.bf16.mxu0 0
  %2078 = vmatpush1.bf16.msra.mxu0 %v1839
  %2079 = vmatprep.subr.bf16.mxu0 0
  %2080 = vmatpush1.bf16.msra.mxu0 %v1840
  %2081 = vmatprep.subr.bf16.mxu0 0
  %2082 = vmatpush1.bf16.msra.mxu0 %v1841
  %2083 = vmatprep.subr.bf16.mxu0 0
  %2084 = vmatpush1.bf16.msra.mxu0 %v1842
  %2085 = vmatprep.subr.bf16.mxu0 0
  %2086 = vmatpush1.bf16.msra.mxu0 %v1843
  %2087 = vmatprep.subr.bf16.mxu0 0
  %2088 = vmatpush1.bf16.msra.mxu0 %v1844
  %2089 = vmatprep.subr.bf16.mxu0 0
  %2090 = vmatpush1.bf16.msra.mxu0 %v1845
  %2091 = vmatprep.subr.bf16.mxu0 0
  %2092 = vmatpush1.bf16.msra.mxu0 %v1846
  %2093 = vmatprep.subr.bf16.mxu0 0
  %2094 = vmatpush1.bf16.msra.mxu0 %v1847
  %2095 = vmatprep.subr.bf16.mxu0 0
  %2096 = vmatpush1.bf16.msra.mxu0 %v1848
  %2097 = vmatprep.mubr.bf16.mxu0 %v1295
  %2098 = vmatmul.mubr.bf16.gmra.mrb[0].mxu0 %v1294
  %v2099 = vpop.f32.mrb[0].mxu0
  %v2100 = vadd.f32 %v2060, %v2099
  %v2101 = vpop.f32.mrb[0].mxu0
  %v2102 = vpop.f32.mrb[0].mxu0
  %v2103 = vpop.f32.mrb[0].mxu0
  %2104 = vdwg.mxu0
  %2105 = vmatprep.subr.bf16.mxu0 0
  %2106 = vmatpush1.bf16.msra.mxu0 %v1849
  %2107 = vmatprep.subr.bf16.mxu0 0
  %2108 = vmatpush1.bf16.msra.mxu0 %v1850
  %2109 = vmatprep.subr.bf16.mxu0 0
  %2110 = vmatpush1.bf16.msra.mxu0 %v1851
  %2111 = vmatprep.subr.bf16.mxu0 0
  %2112 = vmatpush1.bf16.msra.mxu0 %v1852
  %2113 = vmatprep.subr.bf16.mxu0 0
  %2114 = vmatpush1.bf16.msra.mxu0 %v1853
  %2115 = vmatprep.subr.bf16.mxu0 0
  %2116 = vmatpush1.bf16.msra.mxu0 %v1854
  %2117 = vmatprep.subr.bf16.mxu0 0
  %2118 = vmatpush1.bf16.msra.mxu0 %v1855
  %2119 = vmatprep.subr.bf16.mxu0 0
  %2120 = vmatpush1.bf16.msra.mxu0 %v1856
  %2121 = vmatprep.subr.bf16.mxu0 0
  %2122 = vmatpush1.bf16.msra.mxu0 %v1857
  %2123 = vmatprep.subr.bf16.mxu0 0
  %2124 = vmatpush1.bf16.msra.mxu0 %v1858
  %2125 = vmatprep.subr.bf16.mxu0 0
  %2126 = vmatpush1.bf16.msra.mxu0 %v1859
  %2127 = vmatprep.subr.bf16.mxu0 0
  %2128 = vmatpush1.bf16.msra.mxu0 %v1860
  %2129 = vmatprep.subr.bf16.mxu0 0
  %2130 = vmatpush1.bf16.msra.mxu0 %v1861
  %2131 = vmatprep.subr.bf16.mxu0 0
  %2132 = vmatpush1.bf16.msra.mxu0 %v1862
  %2133 = vmatprep.subr.bf16.mxu0 0
  %2134 = vmatpush1.bf16.msra.mxu0 %v1863
  %2135 = vmatprep.subr.bf16.mxu0 0
  %2136 = vmatpush1.bf16.msra.mxu0 %v1864
  %2137 = vmatprep.mubr.bf16.mxu0 %v1297
  %2138 = vmatmul.mubr.bf16.gmra.mrb[0].mxu0 %v1296
  %v2139 = vpop.f32.mrb[0].mxu0
  %v2140 = vadd.f32 %v2100, %v2139
  %v2141 = vpop.f32.mrb[0].mxu0
  %v2142 = vpop.f32.mrb[0].mxu0
  %v2143 = vpop.f32.mrb[0].mxu0
  %2144 = vdwg.mxu0
  %2145 = vst [vmem:[%s7] sm:$0xff] %v2140
  // Predicated region
  $region30: #{transfer_learning_forward.1} parent=0 // pred_check
    _
  $region31: #{transfer_learning_forward.1} parent=0 // pred_check_branch
    %2147 = sbr.rel (0) target = $region33
  $region32: #{transfer_learning_forward.1} parent=0 // pred_region
    _
  $region33: #{transfer_learning_forward.1} parent=0 // pred_fallthru
    _
  // Predicated region
  $region34: #{transfer_learning_forward.1} parent=0 // pred_check
    _
  $region35: #{transfer_learning_forward.1} parent=0 // pred_check_branch
    %2149 = sbr.rel (0) target = $region37
  $region36: #{transfer_learning_forward.1} parent=0 // pred_region
    _
  $region37: #{transfer_learning_forward.1} parent=0 // pred_fallthru
    _

</llo_original>
